<compile_context>
chip_gen: v7x
topology: tpu7x:2x2x1
jax: 0.10.0
libtpu: 0.0.40
codegen_flags: <defaults>
</compile_context>

<pallas_src>
import functools

import jax
import jax.numpy as jnp
from jax.experimental import pallas as pl
from jax.experimental.pallas import tpu as pltpu

LANE = 128
_VMEM_LIMIT = 64 * 1024 * 1024


def _round_up(x, m):
    return (x + m - 1) // m * m


def _pick_tile(n, prefs):
    """Largest preferred tile that divides n (n is always a multiple of 128)."""
    for p in prefs:
        if p <= n and n % p == 0:
            return p
    return n


# ----------------------------------------------------------------------------
# Kernel 1: feature transform  XW = X @ W   (tiled, f32 accumulate, bf16 out)
# ----------------------------------------------------------------------------
def _xw_kernel(x_ref, w_ref, o_ref, acc_ref):
    @pl.when(pl.program_id(1) == 0)
    def _():
        acc_ref[...] = jnp.zeros_like(acc_ref)

    acc_ref[...] += jnp.dot(x_ref[...], w_ref[...],
                            preferred_element_type=jnp.float32)

    @pl.when(pl.program_id(1) == pl.num_programs(1) - 1)
    def _():
        o_ref[...] = acc_ref[...].astype(o_ref.dtype)


def feature_transform(x, w, *, out_dtype=jnp.bfloat16):
    m, k = x.shape
    n = w.shape[1]
    tm = _pick_tile(m, (512, 256, 128))
    tk = _pick_tile(k, (512, 256, 128))
    grid = (m // tm, k // tk)
    cost = pl.CostEstimate(
        flops=2 * m * k * n,
        transcendentals=0,
        bytes_accessed=m * k * 2 + k * n * 2 + m * n * 2,
    )
    return pl.pallas_call(
        _xw_kernel,
        out_shape=jax.ShapeDtypeStruct((m, n), out_dtype),
        grid=grid,
        in_specs=[
            pl.BlockSpec((tm, tk), lambda i, kk: (i, kk)),
            pl.BlockSpec((tk, n), lambda i, kk: (kk, 0)),
        ],
        out_specs=pl.BlockSpec((tm, n), lambda i, kk: (i, 0)),
        scratch_shapes=[pltpu.VMEM((tm, n), jnp.float32)],
        compiler_params=pltpu.CompilerParams(
            dimension_semantics=("parallel", "arbitrary"),
            vmem_limit_bytes=_VMEM_LIMIT,
        ),
        cost_estimate=cost,
    )(x, w)


# ----------------------------------------------------------------------------
# Kernel 2: aggregation + bias + ReLU   out = relu(A_hat @ XW + b)
# ----------------------------------------------------------------------------
def _agg_bias_relu_kernel(a_ref, xw_ref, b_ref, o_ref, acc_ref):
    @pl.when(pl.program_id(1) == 0)
    def _():
        acc_ref[...] = jnp.zeros_like(acc_ref)

    acc_ref[...] += jnp.dot(a_ref[...], xw_ref[...],
                            preferred_element_type=jnp.float32)

    @pl.when(pl.program_id(1) == pl.num_programs(1) - 1)
    def _():
        o_ref[...] = jnp.maximum(acc_ref[...] + b_ref[...], 0.0).astype(o_ref.dtype)


def aggregate_bias_relu(a_hat, xw, bias, *, out_dtype=jnp.bfloat16):
    n = a_hat.shape[0]
    f = xw.shape[1]
    tm = _pick_tile(n, (512, 256, 128))
    tk = _pick_tile(n, (512, 256, 128))
    grid = (n // tm, n // tk)
    cost = pl.CostEstimate(
        flops=2 * n * n * f,
        transcendentals=0,
        bytes_accessed=n * n * 2 + n * f * 2 + f * 4 + n * f * 2,
    )
    return pl.pallas_call(
        _agg_bias_relu_kernel,
        out_shape=jax.ShapeDtypeStruct((n, f), out_dtype),
        grid=grid,
        in_specs=[
            pl.BlockSpec((tm, tk), lambda i, kk: (i, kk)),   # A_hat row/col tile
            pl.BlockSpec((tk, f), lambda i, kk: (kk, 0)),    # XW operand tile
            pl.BlockSpec(bias.shape, lambda i, kk: (0, 0)),  # full (1, F) bias
        ],
        out_specs=pl.BlockSpec((tm, f), lambda i, kk: (i, 0)),
        scratch_shapes=[pltpu.VMEM((tm, f), jnp.float32)],
        compiler_params=pltpu.CompilerParams(
            dimension_semantics=("parallel", "arbitrary"),
            vmem_limit_bytes=_VMEM_LIMIT,
        ),
        cost_estimate=cost,
    )(a_hat, xw, bias)


def gcn_layer(a_hat_bf16, h, w_bf16, b_f32, *, out_dtype=jnp.bfloat16):
    xw = feature_transform(h, w_bf16)                      # hoisted X @ W (bf16)
    return aggregate_bias_relu(a_hat_bf16, xw, b_f32, out_dtype=out_dtype)


# ----------------------------------------------------------------------------
# Graph preprocessing (plain JAX glue, matches PyG gcn_norm add_self_loops)
# ----------------------------------------------------------------------------
def build_norm_adj(edge_index, n_nodes):
    """Dense D^{-1/2}(A+I)D^{-1/2}."""
    src = edge_index[0]
    dst = edge_index[1]
    loop = jnp.arange(n_nodes, dtype=edge_index.dtype)
    src = jnp.concatenate([src, loop])
    dst = jnp.concatenate([dst, loop])
    deg = jnp.zeros((n_nodes,), jnp.float32).at[dst].add(1.0)
    dinv = jnp.where(deg > 0, 1.0 / jnp.sqrt(deg), 0.0)
    norm = dinv[src] * dinv[dst]
    # message flows source -> target; row = target, col = source
    return jnp.zeros((n_nodes, n_nodes), jnp.float32).at[dst, src].add(norm)


def _pad2d(x, rows, cols):
    r, c = x.shape
    return jnp.pad(x, ((0, rows - r), (0, cols - c)))


def init_params(key, nfeat, nhid, nclass):
    def glorot(k, fan_in, fan_out):
        lim = jnp.sqrt(6.0 / (fan_in + fan_out))
        return jax.random.uniform(k, (fan_in, fan_out), jnp.float32, -lim, lim)

    k1, k2, k3 = jax.random.split(key, 3)
    return {
        "w_enc": glorot(k1, nfeat, nhid),
        "b_enc": jnp.zeros((1, nhid), jnp.float32),
        "w_conv": glorot(k2, nhid, nhid),
        "b_conv": jnp.zeros((1, nhid), jnp.float32),
        "w_dec": glorot(k3, nhid, nclass),
        "b_dec": jnp.zeros((1, nclass), jnp.float32),
    }


# ----------------------------------------------------------------------------
# Full forward (eval mode: dropout p=0 -> identity)
# ----------------------------------------------------------------------------
@functools.partial(jax.jit, static_argnames=("nlayers",))
def plain_gnn_forward(x, edge_index, params, nlayers):
    n_nodes, nfeat = x.shape
    nhid = params["w_enc"].shape[1]
    nclass = params["w_dec"].shape[1]

    n_pad = _round_up(n_nodes, LANE)
    nfeat_p = _round_up(nfeat, LANE)
    nhid_p = _round_up(nhid, LANE)
    nclass_p = _round_up(nclass, LANE)

    # Normalized dense adjacency, built on real nodes then zero-padded
    # (padded rows/cols are zero -> padded node outputs never leak into real ones).
    a_hat = _pad2d(build_norm_adj(edge_index, n_nodes), n_pad, n_pad)
    a_hat = a_hat.astype(jnp.bfloat16)

    # Lane-dense, bf16 operands; bias stays f32 (added on the f32 accumulator).
    h = _pad2d(x, n_pad, nfeat_p).astype(jnp.bfloat16)
    w_enc = _pad2d(params["w_enc"], nfeat_p, nhid_p).astype(jnp.bfloat16)
    b_enc = _pad2d(params["b_enc"], 1, nhid_p)
    w_conv = _pad2d(params["w_conv"], nhid_p, nhid_p).astype(jnp.bfloat16)
    b_conv = _pad2d(params["b_conv"], 1, nhid_p)
    w_dec = _pad2d(params["w_dec"], nhid_p, nclass_p).astype(jnp.bfloat16)
    b_dec = _pad2d(params["b_dec"], 1, nclass_p)

    h = gcn_layer(a_hat, h, w_enc, b_enc)                      # relu(enc(X))
    for _ in range(nlayers):                                   # relu(conv(H)) x L
        h = gcn_layer(a_hat, h, w_conv, b_conv)
    out = gcn_layer(a_hat, h, w_dec, b_dec, out_dtype=jnp.float32)  # relu(dec(H))
    return out[:n_nodes, :nclass]


if __name__ == "__main__":
    key = jax.random.PRNGKey(0)
    n_nodes, nfeat, nhid, nclass, nlayers = 64, 32, 32, 8, 2
    n_edges = 256

    k_x, k_e, k_p = jax.random.split(key, 3)
    x = jax.random.normal(k_x, (n_nodes, nfeat), jnp.float32)
    edge_index = jax.random.randint(k_e, (2, n_edges), 0, n_nodes, dtype=jnp.int32)
    params = init_params(k_p, nfeat, nhid, nclass)

    out = plain_gnn_forward(x, edge_index, params, nlayers)
    jax.block_until_ready(out)
    assert out.shape == (n_nodes, nclass)
    print("KERNEL_OK")
</pallas_src>

<mosaic_0001>
module attributes {stable_mosaic.version = 11 : i64} {
  func.func private @main(%arg0: i32) attributes {dimension_semantics = [#tpu.dimension_semantics<core_parallel>], iteration_bounds = array<i64: 2>, tpu.core_type = #tpu.core_type<sc_scalar_subcore>, window_params = []} {
    return
  }
}

module attributes {stable_mosaic.version = 11 : i64} {
  func.func private @main(%arg0: i32) attributes {dimension_semantics = [#tpu.dimension_semantics<core_parallel>], iteration_bounds = array<i64: 2>, tpu.core_type = #tpu.core_type<sc_scalar_subcore>, window_params = []} {
    return
  }
}

module attributes {stable_mosaic.version = 11 : i64} {
  func.func @_xw_kernel(%arg0: i32, %arg1: i32, %arg2: memref<128x128xbf16, #tpu.memory_space<vmem>>, %arg3: memref<128x128xbf16, #tpu.memory_space<vmem>>, %arg4: memref<128x128xbf16, #tpu.memory_space<vmem>>, %arg5: memref<128x128xf32, #tpu.memory_space<vmem>>) attributes {dimension_semantics = [#tpu.dimension_semantics<parallel>, #tpu.dimension_semantics<arbitrary>], iteration_bounds = array<i64: 1, 1>, scalar_prefetch = 0 : i64, scratch_operands = 1 : i64, tpu.core_type = #tpu.core_type<tc>, window_params = [{transform_indices = @transform_0, window_bounds = array<i64: 128, 128>}, {transform_indices = @transform_1, window_bounds = array<i64: 128, 128>}, {transform_indices = @transform_2, window_bounds = array<i64: 128, 128>}]} {
    %c0_i32 = arith.constant 0 : i32
    %0 = arith.cmpi eq, %arg1, %c0_i32 : i32
    %1 = arith.extui %0 : i1 to i32
    %c0_i32_0 = arith.constant 0 : i32
    %2 = arith.cmpi ne, %1, %c0_i32_0 : i32
    scf.if %2 {
      %cst_10 = arith.constant 0.000000e+00 : f32
      %12 = vector.broadcast %cst_10 : f32 to vector<128x128xf32>
      %c0_11 = arith.constant 0 : index
      %c0_12 = arith.constant 0 : index
      %13 = vector.load %arg5[%c0_11, %c0_12] : memref<128x128xf32, #tpu.memory_space<vmem>>, vector<128x128xf32>
      tpu.vector_store %arg5[%c0_11, %c0_12], %12 {strides = array<i32>} : memref<128x128xf32, #tpu.memory_space<vmem>>, vector<128x128xf32>,
    } else {
    }
    %c0 = arith.constant 0 : index
    %c0_1 = arith.constant 0 : index
    %3 = vector.load %arg5[%c0, %c0_1] : memref<128x128xf32, #tpu.memory_space<vmem>>, vector<128x128xf32>
    %c0_2 = arith.constant 0 : index
    %c0_3 = arith.constant 0 : index
    %4 = vector.load %arg2[%c0_2, %c0_3] : memref<128x128xbf16, #tpu.memory_space<vmem>>, vector<128x128xbf16>
    %c0_4 = arith.constant 0 : index
    %c0_5 = arith.constant 0 : index
    %5 = vector.load %arg3[%c0_4, %c0_5] : memref<128x128xbf16, #tpu.memory_space<vmem>>, vector<128x128xbf16>
    %cst = arith.constant dense<0.000000e+00> : vector<128x128xf32>
    %6 = tpu.matmul %4, %5, %cst {dimension_numbers = #tpu.dot_dimension_numbers<[1], [0], [0], [1], [0, 0, 1, 1], [], []>} : vector<128x128xbf16>, vector<128x128xbf16>, vector<128x128xf32> -> vector<128x128xf32>
    %7 = arith.addf %3, %6 : vector<128x128xf32>
    %c0_6 = arith.constant 0 : index
    %c0_7 = arith.constant 0 : index
    %8 = vector.load %arg5[%c0_6, %c0_7] : memref<128x128xf32, #tpu.memory_space<vmem>>, vector<128x128xf32>
    tpu.vector_store %arg5[%c0_6, %c0_7], %7 {strides = array<i32>} : memref<128x128xf32, #tpu.memory_space<vmem>>, vector<128x128xf32>,
    %c0_i32_8 = arith.constant 0 : i32
    %9 = arith.cmpi eq, %arg1, %c0_i32_8 : i32
    %10 = arith.extui %9 : i1 to i32
    %c0_i32_9 = arith.constant 0 : i32
    %11 = arith.cmpi ne, %10, %c0_i32_9 : i32
    scf.if %11 {
      %c0_10 = arith.constant 0 : index
      %c0_11 = arith.constant 0 : index
      %12 = vector.load %arg5[%c0_10, %c0_11] : memref<128x128xf32, #tpu.memory_space<vmem>>, vector<128x128xf32>
      %13 = arith.truncf %12 : vector<128x128xf32> to vector<128x128xbf16>
      %c0_12 = arith.constant 0 : index
      %c0_13 = arith.constant 0 : index
      %14 = vector.load %arg4[%c0_12, %c0_13] : memref<128x128xbf16, #tpu.memory_space<vmem>>, vector<128x128xbf16>
      tpu.vector_store %arg4[%c0_12, %c0_13], %13 {strides = array<i32>} : memref<128x128xbf16, #tpu.memory_space<vmem>>, vector<128x128xbf16>,
    } else {
    }
    return
  }
  func.func @transform_0(%arg0: i32, %arg1: i32) -> (i32, i32) {
    %c0_i32 = arith.constant 0 : i32
    return %arg0, %arg1 : i32, i32
  }
  func.func @transform_1(%arg0: i32, %arg1: i32) -> (i32, i32) {
    %c0_i32 = arith.constant 0 : i32
    %c0_i32_0 = arith.constant 0 : i32
    return %arg1, %c0_i32 : i32, i32
  }
  func.func @transform_2(%arg0: i32, %arg1: i32) -> (i32, i32) {
    %c0_i32 = arith.constant 0 : i32
    %c0_i32_0 = arith.constant 0 : i32
    return %arg0, %c0_i32 : i32, i32
  }
}

module attributes {stable_mosaic.version = 11 : i64} {
  func.func @_agg_bias_relu_kernel(%arg0: i32, %arg1: i32, %arg2: memref<128x128xbf16, #tpu.memory_space<vmem>>, %arg3: memref<128x128xbf16, #tpu.memory_space<vmem>>, %arg4: memref<1x128xf32, #tpu.memory_space<vmem>>, %arg5: memref<128x128xbf16, #tpu.memory_space<vmem>>, %arg6: memref<128x128xf32, #tpu.memory_space<vmem>>) attributes {dimension_semantics = [#tpu.dimension_semantics<parallel>, #tpu.dimension_semantics<arbitrary>], iteration_bounds = array<i64: 1, 1>, scalar_prefetch = 0 : i64, scratch_operands = 1 : i64, tpu.core_type = #tpu.core_type<tc>, window_params = [{transform_indices = @transform_0, window_bounds = array<i64: 128, 128>}, {transform_indices = @transform_1, window_bounds = array<i64: 128, 128>}, {pipeline_mode = #tpu.pipeline_mode<synchronous>, transform_indices = @transform_2, window_bounds = array<i64: 1, 128>}, {transform_indices = @transform_3, window_bounds = array<i64: 128, 128>}]} {
    %c0_i32 = arith.constant 0 : i32
    %0 = arith.cmpi eq, %arg1, %c0_i32 : i32
    %1 = arith.extui %0 : i1 to i32
    %c0_i32_0 = arith.constant 0 : i32
    %2 = arith.cmpi ne, %1, %c0_i32_0 : i32
    scf.if %2 {
      %cst_10 = arith.constant 0.000000e+00 : f32
      %12 = vector.broadcast %cst_10 : f32 to vector<128x128xf32>
      %c0_11 = arith.constant 0 : index
      %c0_12 = arith.constant 0 : index
      %13 = vector.load %arg6[%c0_11, %c0_12] : memref<128x128xf32, #tpu.memory_space<vmem>>, vector<128x128xf32>
      tpu.vector_store %arg6[%c0_11, %c0_12], %12 {strides = array<i32>} : memref<128x128xf32, #tpu.memory_space<vmem>>, vector<128x128xf32>,
    } else {
    }
    %c0 = arith.constant 0 : index
    %c0_1 = arith.constant 0 : index
    %3 = vector.load %arg6[%c0, %c0_1] : memref<128x128xf32, #tpu.memory_space<vmem>>, vector<128x128xf32>
    %c0_2 = arith.constant 0 : index
    %c0_3 = arith.constant 0 : index
    %4 = vector.load %arg2[%c0_2, %c0_3] : memref<128x128xbf16, #tpu.memory_space<vmem>>, vector<128x128xbf16>
    %c0_4 = arith.constant 0 : index
    %c0_5 = arith.constant 0 : index
    %5 = vector.load %arg3[%c0_4, %c0_5] : memref<128x128xbf16, #tpu.memory_space<vmem>>, vector<128x128xbf16>
    %cst = arith.constant dense<0.000000e+00> : vector<128x128xf32>
    %6 = tpu.matmul %4, %5, %cst {dimension_numbers = #tpu.dot_dimension_numbers<[1], [0], [0], [1], [0, 0, 1, 1], [], []>} : vector<128x128xbf16>, vector<128x128xbf16>, vector<128x128xf32> -> vector<128x128xf32>
    %7 = arith.addf %3, %6 : vector<128x128xf32>
    %c0_6 = arith.constant 0 : index
    %c0_7 = arith.constant 0 : index
    %8 = vector.load %arg6[%c0_6, %c0_7] : memref<128x128xf32, #tpu.memory_space<vmem>>, vector<128x128xf32>
    tpu.vector_store %arg6[%c0_6, %c0_7], %7 {strides = array<i32>} : memref<128x128xf32, #tpu.memory_space<vmem>>, vector<128x128xf32>,
    %c0_i32_8 = arith.constant 0 : i32
    %9 = arith.cmpi eq, %arg1, %c0_i32_8 : i32
    %10 = arith.extui %9 : i1 to i32
    %c0_i32_9 = arith.constant 0 : i32
    %11 = arith.cmpi ne, %10, %c0_i32_9 : i32
    scf.if %11 {
      %c0_10 = arith.constant 0 : index
      %c0_11 = arith.constant 0 : index
      %12 = vector.load %arg6[%c0_10, %c0_11] : memref<128x128xf32, #tpu.memory_space<vmem>>, vector<128x128xf32>
      %c0_12 = arith.constant 0 : index
      %c0_13 = arith.constant 0 : index
      %13 = vector.load %arg4[%c0_12, %c0_13] : memref<1x128xf32, #tpu.memory_space<vmem>>, vector<1x128xf32>
      %14 = vector.broadcast %13 : vector<1x128xf32> to vector<128x128xf32>
      %15 = arith.addf %12, %14 : vector<128x128xf32>
      %cst_14 = arith.constant 0.000000e+00 : f32
      %16 = vector.broadcast %cst_14 : f32 to vector<128x128xf32>
      %17 = arith.maximumf %15, %16 : vector<128x128xf32>
      %18 = arith.truncf %17 : vector<128x128xf32> to vector<128x128xbf16>
      %c0_15 = arith.constant 0 : index
      %c0_16 = arith.constant 0 : index
      %19 = vector.load %arg5[%c0_15, %c0_16] : memref<128x128xbf16, #tpu.memory_space<vmem>>, vector<128x128xbf16>
      tpu.vector_store %arg5[%c0_15, %c0_16], %18 {strides = array<i32>} : memref<128x128xbf16, #tpu.memory_space<vmem>>, vector<128x128xbf16>,
    } else {
    }
    return
  }
  func.func @transform_0(%arg0: i32, %arg1: i32) -> (i32, i32) {
    %c0_i32 = arith.constant 0 : i32
    return %arg0, %arg1 : i32, i32
  }
  func.func @transform_1(%arg0: i32, %arg1: i32) -> (i32, i32) {
    %c0_i32 = arith.constant 0 : i32
    %c0_i32_0 = arith.constant 0 : i32
    return %arg1, %c0_i32 : i32, i32
  }
  func.func @transform_2(%arg0: i32, %arg1: i32) -> (i32, i32) {
    %c0_i32 = arith.constant 0 : i32
    %c0_i32_0 = arith.constant 0 : i32
    %c0_i32_1 = arith.constant 0 : i32
    return %c0_i32, %c0_i32_0 : i32, i32
  }
  func.func @transform_3(%arg0: i32, %arg1: i32) -> (i32, i32) {
    %c0_i32 = arith.constant 0 : i32
    %c0_i32_0 = arith.constant 0 : i32
    return %arg0, %c0_i32 : i32, i32
  }
}

module attributes {stable_mosaic.version = 11 : i64} {
  func.func @_agg_bias_relu_kernel(%arg0: i32, %arg1: i32, %arg2: memref<128x128xbf16, #tpu.memory_space<vmem>>, %arg3: memref<128x128xbf16, #tpu.memory_space<vmem>>, %arg4: memref<1x128xf32, #tpu.memory_space<vmem>>, %arg5: memref<128x128xf32, #tpu.memory_space<vmem>>, %arg6: memref<128x128xf32, #tpu.memory_space<vmem>>) attributes {dimension_semantics = [#tpu.dimension_semantics<parallel>, #tpu.dimension_semantics<arbitrary>], iteration_bounds = array<i64: 1, 1>, scalar_prefetch = 0 : i64, scratch_operands = 1 : i64, tpu.core_type = #tpu.core_type<tc>, window_params = [{transform_indices = @transform_0, window_bounds = array<i64: 128, 128>}, {transform_indices = @transform_1, window_bounds = array<i64: 128, 128>}, {pipeline_mode = #tpu.pipeline_mode<synchronous>, transform_indices = @transform_2, window_bounds = array<i64: 1, 128>}, {transform_indices = @transform_3, window_bounds = array<i64: 128, 128>}]} {
    %c0_i32 = arith.constant 0 : i32
    %0 = arith.cmpi eq, %arg1, %c0_i32 : i32
    %1 = arith.extui %0 : i1 to i32
    %c0_i32_0 = arith.constant 0 : i32
    %2 = arith.cmpi ne, %1, %c0_i32_0 : i32
    scf.if %2 {
      %cst_10 = arith.constant 0.000000e+00 : f32
      %12 = vector.broadcast %cst_10 : f32 to vector<128x128xf32>
      %c0_11 = arith.constant 0 : index
      %c0_12 = arith.constant 0 : index
      %13 = vector.load %arg6[%c0_11, %c0_12] : memref<128x128xf32, #tpu.memory_space<vmem>>, vector<128x128xf32>
      tpu.vector_store %arg6[%c0_11, %c0_12], %12 {strides = array<i32>} : memref<128x128xf32, #tpu.memory_space<vmem>>, vector<128x128xf32>,
    } else {
    }
    %c0 = arith.constant 0 : index
    %c0_1 = arith.constant 0 : index
    %3 = vector.load %arg6[%c0, %c0_1] : memref<128x128xf32, #tpu.memory_space<vmem>>, vector<128x128xf32>
    %c0_2 = arith.constant 0 : index
    %c0_3 = arith.constant 0 : index
    %4 = vector.load %arg2[%c0_2, %c0_3] : memref<128x128xbf16, #tpu.memory_space<vmem>>, vector<128x128xbf16>
    %c0_4 = arith.constant 0 : index
    %c0_5 = arith.constant 0 : index
    %5 = vector.load %arg3[%c0_4, %c0_5] : memref<128x128xbf16, #tpu.memory_space<vmem>>, vector<128x128xbf16>
    %cst = arith.constant dense<0.000000e+00> : vector<128x128xf32>
    %6 = tpu.matmul %4, %5, %cst {dimension_numbers = #tpu.dot_dimension_numbers<[1], [0], [0], [1], [0, 0, 1, 1], [], []>} : vector<128x128xbf16>, vector<128x128xbf16>, vector<128x128xf32> -> vector<128x128xf32>
    %7 = arith.addf %3, %6 : vector<128x128xf32>
    %c0_6 = arith.constant 0 : index
    %c0_7 = arith.constant 0 : index
    %8 = vector.load %arg6[%c0_6, %c0_7] : memref<128x128xf32, #tpu.memory_space<vmem>>, vector<128x128xf32>
    tpu.vector_store %arg6[%c0_6, %c0_7], %7 {strides = array<i32>} : memref<128x128xf32, #tpu.memory_space<vmem>>, vector<128x128xf32>,
    %c0_i32_8 = arith.constant 0 : i32
    %9 = arith.cmpi eq, %arg1, %c0_i32_8 : i32
    %10 = arith.extui %9 : i1 to i32
    %c0_i32_9 = arith.constant 0 : i32
    %11 = arith.cmpi ne, %10, %c0_i32_9 : i32
    scf.if %11 {
      %c0_10 = arith.constant 0 : index
      %c0_11 = arith.constant 0 : index
      %12 = vector.load %arg6[%c0_10, %c0_11] : memref<128x128xf32, #tpu.memory_space<vmem>>, vector<128x128xf32>
      %c0_12 = arith.constant 0 : index
      %c0_13 = arith.constant 0 : index
      %13 = vector.load %arg4[%c0_12, %c0_13] : memref<1x128xf32, #tpu.memory_space<vmem>>, vector<1x128xf32>
      %14 = vector.broadcast %13 : vector<1x128xf32> to vector<128x128xf32>
      %15 = arith.addf %12, %14 : vector<128x128xf32>
      %cst_14 = arith.constant 0.000000e+00 : f32
      %16 = vector.broadcast %cst_14 : f32 to vector<128x128xf32>
      %17 = arith.maximumf %15, %16 : vector<128x128xf32>
      %c0_15 = arith.constant 0 : index
      %c0_16 = arith.constant 0 : index
      %18 = vector.load %arg5[%c0_15, %c0_16] : memref<128x128xf32, #tpu.memory_space<vmem>>, vector<128x128xf32>
      tpu.vector_store %arg5[%c0_15, %c0_16], %17 {strides = array<i32>} : memref<128x128xf32, #tpu.memory_space<vmem>>, vector<128x128xf32>,
    } else {
    }
    return
  }
  func.func @transform_0(%arg0: i32, %arg1: i32) -> (i32, i32) {
    %c0_i32 = arith.constant 0 : i32
    return %arg0, %arg1 : i32, i32
  }
  func.func @transform_1(%arg0: i32, %arg1: i32) -> (i32, i32) {
    %c0_i32 = arith.constant 0 : i32
    %c0_i32_0 = arith.constant 0 : i32
    return %arg1, %c0_i32 : i32, i32
  }
  func.func @transform_2(%arg0: i32, %arg1: i32) -> (i32, i32) {
    %c0_i32 = arith.constant 0 : i32
    %c0_i32_0 = arith.constant 0 : i32
    %c0_i32_1 = arith.constant 0 : i32
    return %c0_i32, %c0_i32_0 : i32, i32
  }
  func.func @transform_3(%arg0: i32, %arg1: i32) -> (i32, i32) {
    %c0_i32 = arith.constant 0 : i32
    %c0_i32_0 = arith.constant 0 : i32
    return %arg0, %c0_i32 : i32, i32
  }
}

</mosaic_0001>

<llo_original>
// kernel: plain_gnn_forward.8
$region0: #{plain_gnn_forward.8}
  #allocation0 [shape = 'u32[]', space=smem, size = 0x4, offset = 0x4, fixed_abs, tag = 'smem constant byte address 0x4 - core index']
  #allocation1 [shape = 'u32[144,128]{1,0:T(1,128)}', space=vmem, size = 0x12000, scoped, tag = 'internal scratch']
  #allocation2 [shape = 'f32[128,128]{1,0:T(8,128)}', space=vmem, size = 0x10000, scoped, tag = 'scratch operand']
  %s0 = inlined_call_operand.hbm [shape: bf16[128,128], index: 0, kind: input, shape index: {}]
  %s1 = inlined_call_operand.hbm [shape: bf16[128,128], index: 1, kind: input, shape index: {}]
  %s2 = inlined_call_operand.hbm [shape: bf16[128,128], index: 2, kind: output, shape index: {}]
  %s3 = sld [smem:[#allocation0]]
  $region34: #{plain_gnn_forward.8} parent=0
    _
  %s5 = ssub.s32 1, %s3
  %s6 = scalar_select 0, %s5, %s3
  $region1: #{plain_gnn_forward.8} parent=0
    #allocation3 [shape = 'u8[32768]{0}', space=vmem, size = 0x8000, scoped, tag = 'input window, operand 0, single buffered']
    #allocation4 [shape = 's32[1]{0}', space=sflag, size = 0x4, scoped, tag = 'scoped memory for plain_gnn_forward.8']
    #allocation5 [shape = 's32[1]{0}', space=sflag, size = 0x4, scoped, tag = 'scoped memory for plain_gnn_forward.8']
    #allocation6 [shape = 'u8[32768]{0}', space=vmem, size = 0x8000, scoped, tag = 'input window, operand 1, single buffered']
    #allocation7 [shape = 's32[1]{0}', space=sflag, size = 0x4, scoped, tag = 'scoped memory for plain_gnn_forward.8']
    #allocation8 [shape = 'u8[32768]{0}', space=vmem, size = 0x8000, scoped, tag = 'output window, operand 0, single buffered']
    %7 = vsyncpa [#allocation4], 0
    %8 = vsyncpa [#allocation7], 0
    %9 = vsyncpa [#allocation5], 0
    // Predicated region
    $region2: #{plain_gnn_forward.8} parent=1 // pred_check
      _
    $region3: #{plain_gnn_forward.8} parent=1 // pred_check_branch
      %11 = sbr.rel (0) target = $region5
    $region4: #{plain_gnn_forward.8} parent=1 // pred_region
      %s13 = ssub.s32 1024, 1024
      %14 = vsyncadd [#allocation4], %s13
      %s15 = sshll.u32 [#allocation3], 4
      %s16 = int_to_ptr.vmem [resolvable:$true] %s15
      %21 = dma.hbm_to_vmem [thread:$0]  %s0, 1024, %s16, [#allocation4], 64, 64, 4
    $region5: #{plain_gnn_forward.8} parent=1 // pred_fallthru
      _
    // Predicated region
    $region6: #{plain_gnn_forward.8} parent=1 // pred_check
      _
    $region7: #{plain_gnn_forward.8} parent=1 // pred_check_branch
      %23 = sbr.rel (0) target = $region9
    $region8: #{plain_gnn_forward.8} parent=1 // pred_region
      %s25 = ssub.s32 1024, 1024
      %26 = vsyncadd [#allocation7], %s25
      %s27 = sshll.u32 [#allocation6], 4
      %s28 = int_to_ptr.vmem [resolvable:$true] %s27
      %33 = dma.hbm_to_vmem [thread:$0]  %s1, 1024, %s28, [#allocation7], 64, 64, 4
    $region9: #{plain_gnn_forward.8} parent=1 // pred_fallthru
      _
    // Predicated region
    $region10: #{plain_gnn_forward.8} parent=1 // pred_check
      _
    $region11: #{plain_gnn_forward.8} parent=1 // pred_check_branch
      %35 = sbr.rel (0) target = $region13
    $region12: #{plain_gnn_forward.8} parent=1 // pred_region
      %36 = dma.done [#allocation4], 1024
    $region13: #{plain_gnn_forward.8} parent=1 // pred_fallthru
      _
    // Predicated region
    $region14: #{plain_gnn_forward.8} parent=1 // pred_check
      _
    $region15: #{plain_gnn_forward.8} parent=1 // pred_check_branch
      %38 = sbr.rel (0) target = $region17
    $region16: #{plain_gnn_forward.8} parent=1 // pred_region
      %39 = dma.done [#allocation7], 1024
    $region17: #{plain_gnn_forward.8} parent=1 // pred_fallthru
      _
    %p41 = scmp.eq.s32.totalorder 0, 0
    // Predicated region
    $region18: #{plain_gnn_forward.8} parent=1 // pred_check
      %p42 = pneg %p41
    $region19: #{plain_gnn_forward.8} parent=1 // pred_check_branch
      %44 = sbr.rel (%p42) target = $region21
    $region20: #{plain_gnn_forward.8} parent=1 // pred_region
      %45 = vst [vmem:[#allocation2] sm:$0xff] 0.0
      %46 = vst [vmem:[#allocation2 + $0x8] sm:$0xff] 0.0
      %47 = vst [vmem:[#allocation2 + $0x10] sm:$0xff] 0.0
      %48 = vst [vmem:[#allocation2 + $0x18] sm:$0xff] 0.0
      %49 = vst [vmem:[#allocation2 + $0x20] sm:$0xff] 0.0
      %50 = vst [vmem:[#allocation2 + $0x28] sm:$0xff] 0.0
      %51 = vst [vmem:[#allocation2 + $0x30] sm:$0xff] 0.0
      %52 = vst [vmem:[#allocation2 + $0x38] sm:$0xff] 0.0
      %53 = vst [vmem:[#allocation2 + $0x40] sm:$0xff] 0.0
      %54 = vst [vmem:[#allocation2 + $0x48] sm:$0xff] 0.0
      %55 = vst [vmem:[#allocation2 + $0x50] sm:$0xff] 0.0
      %56 = vst [vmem:[#allocation2 + $0x58] sm:$0xff] 0.0
      %57 = vst [vmem:[#allocation2 + $0x60] sm:$0xff] 0.0
      %58 = vst [vmem:[#allocation2 + $0x68] sm:$0xff] 0.0
      %59 = vst [vmem:[#allocation2 + $0x70] sm:$0xff] 0.0
      %60 = vst [vmem:[#allocation2 + $0x78] sm:$0xff] 0.0
    $region21: #{plain_gnn_forward.8} parent=1 // pred_fallthru
      _
    %v61 = vld [vmem:[#allocation2] sm:$0xff]
    %v62 = vld [vmem:[#allocation2 + $0x8] sm:$0xff]
    %v63 = vld [vmem:[#allocation2 + $0x10] sm:$0xff]
    %v64 = vld [vmem:[#allocation2 + $0x18] sm:$0xff]
    %v65 = vld [vmem:[#allocation2 + $0x20] sm:$0xff]
    %v66 = vld [vmem:[#allocation2 + $0x28] sm:$0xff]
    %v67 = vld [vmem:[#allocation2 + $0x30] sm:$0xff]
    %v68 = vld [vmem:[#allocation2 + $0x38] sm:$0xff]
    %v69 = vld [vmem:[#allocation2 + $0x40] sm:$0xff]
    %v70 = vld [vmem:[#allocation2 + $0x48] sm:$0xff]
    %v71 = vld [vmem:[#allocation2 + $0x50] sm:$0xff]
    %v72 = vld [vmem:[#allocation2 + $0x58] sm:$0xff]
    %v73 = vld [vmem:[#allocation2 + $0x60] sm:$0xff]
    %v74 = vld [vmem:[#allocation2 + $0x68] sm:$0xff]
    %v75 = vld [vmem:[#allocation2 + $0x70] sm:$0xff]
    %v76 = vld [vmem:[#allocation2 + $0x78] sm:$0xff]
    %v77 = vld [vmem:[#allocation3] sm:$0xf]
    %v78 = vld [vmem:[#allocation3 + $0x4] sm:$0xf]
    %v79 = vld [vmem:[#allocation3 + $0x8] sm:$0xf]
    %v80 = vld [vmem:[#allocation3 + $0xc] sm:$0xf]
    %v81 = vld [vmem:[#allocation3 + $0x10] sm:$0xf]
    %v82 = vld [vmem:[#allocation3 + $0x14] sm:$0xf]
    %v83 = vld [vmem:[#allocation3 + $0x18] sm:$0xf]
    %v84 = vld [vmem:[#allocation3 + $0x1c] sm:$0xf]
    %v85 = vld [vmem:[#allocation3 + $0x20] sm:$0xf]
    %v86 = vld [vmem:[#allocation3 + $0x24] sm:$0xf]
    %v87 = vld [vmem:[#allocation3 + $0x28] sm:$0xf]
    %v88 = vld [vmem:[#allocation3 + $0x2c] sm:$0xf]
    %v89 = vld [vmem:[#allocation3 + $0x30] sm:$0xf]
    %v90 = vld [vmem:[#allocation3 + $0x34] sm:$0xf]
    %v91 = vld [vmem:[#allocation3 + $0x38] sm:$0xf]
    %v92 = vld [vmem:[#allocation3 + $0x3c] sm:$0xf]
    %v93 = vld [vmem:[#allocation6] sm:$0xf]
    %v94 = vld [vmem:[#allocation6 + $0x4] sm:$0xf]
    %v95 = vld [vmem:[#allocation6 + $0x8] sm:$0xf]
    %v96 = vld [vmem:[#allocation6 + $0xc] sm:$0xf]
    %v97 = vld [vmem:[#allocation6 + $0x10] sm:$0xf]
    %v98 = vld [vmem:[#allocation6 + $0x14] sm:$0xf]
    %v99 = vld [vmem:[#allocation6 + $0x18] sm:$0xf]
    %v100 = vld [vmem:[#allocation6 + $0x1c] sm:$0xf]
    %v101 = vld [vmem:[#allocation6 + $0x20] sm:$0xf]
    %v102 = vld [vmem:[#allocation6 + $0x24] sm:$0xf]
    %v103 = vld [vmem:[#allocation6 + $0x28] sm:$0xf]
    %v104 = vld [vmem:[#allocation6 + $0x2c] sm:$0xf]
    %v105 = vld [vmem:[#allocation6 + $0x30] sm:$0xf]
    %v106 = vld [vmem:[#allocation6 + $0x34] sm:$0xf]
    %v107 = vld [vmem:[#allocation6 + $0x38] sm:$0xf]
    %v108 = vld [vmem:[#allocation6 + $0x3c] sm:$0xf]
    %v125 = vunpack.c.l.b16 %v77
    %v126 = vunpack.c.l.b16 %v78
    %v127 = vunpack.c.l.b16 %v79
    %v128 = vunpack.c.l.b16 %v80
    %v129 = vunpack.c.l.b16 %v81
    %v130 = vunpack.c.l.b16 %v82
    %v131 = vunpack.c.l.b16 %v83
    %v132 = vunpack.c.l.b16 %v84
    %v133 = vunpack.c.l.b16 %v85
    %v134 = vunpack.c.l.b16 %v86
    %v135 = vunpack.c.l.b16 %v87
    %v136 = vunpack.c.l.b16 %v88
    %v137 = vunpack.c.l.b16 %v89
    %v138 = vunpack.c.l.b16 %v90
    %v139 = vunpack.c.l.b16 %v91
    %v140 = vunpack.c.l.b16 %v92
    %v141 = vpack.c.b16 %v126, %v125
    %v142 = vpack.c.b16 %v128, %v127
    %v143 = vpack.c.b16 %v130, %v129
    %v144 = vpack.c.b16 %v132, %v131
    %v145 = vpack.c.b16 %v134, %v133
    %v146 = vpack.c.b16 %v136, %v135
    %v147 = vpack.c.b16 %v138, %v137
    %v148 = vpack.c.b16 %v140, %v139
    %v173 = vunpack.c.l.b16 %v93
    %v174 = vunpack.c.l.b16 %v94
    %v175 = vunpack.c.l.b16 %v95
    %v176 = vunpack.c.l.b16 %v96
    %v177 = vunpack.c.l.b16 %v97
    %v178 = vunpack.c.l.b16 %v98
    %v179 = vunpack.c.l.b16 %v99
    %v180 = vunpack.c.l.b16 %v100
    %v181 = vunpack.c.l.b16 %v101
    %v182 = vunpack.c.l.b16 %v102
    %v183 = vunpack.c.l.b16 %v103
    %v184 = vunpack.c.l.b16 %v104
    %v185 = vunpack.c.l.b16 %v105
    %v186 = vunpack.c.l.b16 %v106
    %v187 = vunpack.c.l.b16 %v107
    %v188 = vunpack.c.l.b16 %v108
    %v189 = vpack.c.b16 %v174, %v173
    %v190 = vpack.c.b16 %v176, %v175
    %v191 = vpack.c.b16 %v178, %v177
    %v192 = vpack.c.b16 %v180, %v179
    %v193 = vpack.c.b16 %v182, %v181
    %v194 = vpack.c.b16 %v184, %v183
    %v195 = vpack.c.b16 %v186, %v185
    %v196 = vpack.c.b16 %v188, %v187
    %205 = vmatprep.subr.bf16.mxu0 0
    %206 = vmatpush1.bf16.msra.mxu0 %v189
    %207 = vmatprep.subr.bf16.mxu0 0
    %208 = vmatpush1.bf16.msra.mxu0 %v190
    %209 = vmatprep.subr.bf16.mxu0 0
    %210 = vmatpush1.bf16.msra.mxu0 %v191
    %211 = vmatprep.subr.bf16.mxu0 0
    %212 = vmatpush1.bf16.msra.mxu0 %v192
    %213 = vmatprep.subr.bf16.mxu0 0
    %214 = vmatpush1.bf16.msra.mxu0 %v193
    %215 = vmatprep.subr.bf16.mxu0 0
    %216 = vmatpush1.bf16.msra.mxu0 %v194
    %217 = vmatprep.subr.bf16.mxu0 0
    %218 = vmatpush1.bf16.msra.mxu0 %v195
    %219 = vmatprep.subr.bf16.mxu0 0
    %220 = vmatpush1.bf16.msra.mxu0 %v196
    %221 = vmatprep.subr.bf16.mxu0 0
    %222 = vmatpush1.bf16.msra.mxu0 0
    %223 = vmatprep.subr.bf16.mxu0 0
    %224 = vmatpush1.bf16.msra.mxu0 0
    %225 = vmatprep.subr.bf16.mxu0 0
    %226 = vmatpush1.bf16.msra.mxu0 0
    %227 = vmatprep.subr.bf16.mxu0 0
    %228 = vmatpush1.bf16.msra.mxu0 0
    %229 = vmatprep.subr.bf16.mxu0 0
    %230 = vmatpush1.bf16.msra.mxu0 0
    %231 = vmatprep.subr.bf16.mxu0 0
    %232 = vmatpush1.bf16.msra.mxu0 0
    %233 = vmatprep.subr.bf16.mxu0 0
    %234 = vmatpush1.bf16.msra.mxu0 0
    %235 = vmatprep.subr.bf16.mxu0 0
    %236 = vmatpush1.bf16.msra.mxu0 0
    %237 = vmatprep.mubr.bf16.mxu0 0
    %238 = vmatmul.mubr.bf16.gmra.mrb[0].mxu0 %v141
    %v239 = vpop.f32.mrb[0].mxu0
    %v240 = vadd.f32 0.0, %v239
    %v241 = vpop.f32.mrb[0].mxu0
    %v242 = vpop.f32.mrb[0].mxu0
    %v243 = vadd.f32 0.0, %v242
    %v244 = vpop.f32.mrb[0].mxu0
    %245 = vmatprep.mubr.bf16.mxu0 0
    %246 = vmatmul.mubr.bf16.gmra.mrb[0].mxu0 %v142
    %v247 = vpop.f32.mrb[0].mxu0
    %v248 = vadd.f32 0.0, %v247
    %v249 = vpop.f32.mrb[0].mxu0
    %v250 = vpop.f32.mrb[0].mxu0
    %v251 = vadd.f32 0.0, %v250
    %v252 = vpop.f32.mrb[0].mxu0
    %253 = vmatprep.mubr.bf16.mxu0 0
    %254 = vmatmul.mubr.bf16.gmra.mrb[0].mxu0 %v143
    %v255 = vpop.f32.mrb[0].mxu0
    %v256 = vadd.f32 0.0, %v255
    %v257 = vpop.f32.mrb[0].mxu0
    %v258 = vpop.f32.mrb[0].mxu0
    %v259 = vadd.f32 0.0, %v258
    %v260 = vpop.f32.mrb[0].mxu0
    %261 = vmatprep.mubr.bf16.mxu0 0
    %262 = vmatmul.mubr.bf16.gmra.mrb[0].mxu0 %v144
    %v263 = vpop.f32.mrb[0].mxu0
    %v264 = vadd.f32 0.0, %v263
    %v265 = vpop.f32.mrb[0].mxu0
    %v266 = vpop.f32.mrb[0].mxu0
    %v267 = vadd.f32 0.0, %v266
    %v268 = vpop.f32.mrb[0].mxu0
    %269 = vmatprep.mubr.bf16.mxu0 0
    %270 = vmatmul.mubr.bf16.gmra.mrb[0].mxu0 %v145
    %v271 = vpop.f32.mrb[0].mxu0
    %v272 = vadd.f32 0.0, %v271
    %v273 = vpop.f32.mrb[0].mxu0
    %v274 = vpop.f32.mrb[0].mxu0
    %v275 = vadd.f32 0.0, %v274
    %v276 = vpop.f32.mrb[0].mxu0
    %277 = vmatprep.mubr.bf16.mxu0 0
    %278 = vmatmul.mubr.bf16.gmra.mrb[0].mxu0 %v146
    %v279 = vpop.f32.mrb[0].mxu0
    %v280 = vadd.f32 0.0, %v279
    %v281 = vpop.f32.mrb[0].mxu0
    %v282 = vpop.f32.mrb[0].mxu0
    %v283 = vadd.f32 0.0, %v282
    %v284 = vpop.f32.mrb[0].mxu0
    %285 = vmatprep.mubr.bf16.mxu0 0
    %286 = vmatmul.mubr.bf16.gmra.mrb[0].mxu0 %v147
    %v287 = vpop.f32.mrb[0].mxu0
    %v288 = vadd.f32 0.0, %v287
    %v289 = vpop.f32.mrb[0].mxu0
    %v290 = vpop.f32.mrb[0].mxu0
    %v291 = vadd.f32 0.0, %v290
    %v292 = vpop.f32.mrb[0].mxu0
    %293 = vmatprep.mubr.bf16.mxu0 0
    %294 = vmatmul.mubr.bf16.gmra.mrb[0].mxu0 %v148
    %v295 = vpop.f32.mrb[0].mxu0
    %v296 = vadd.f32 0.0, %v295
    %v297 = vpop.f32.mrb[0].mxu0
    %v298 = vpop.f32.mrb[0].mxu0
    %v299 = vadd.f32 0.0, %v298
    %v300 = vpop.f32.mrb[0].mxu0
    %301 = vdwg.mxu0
    %v302 = vadd.f32 %v61, %v240
    %v303 = vadd.f32 %v62, %v243
    %v304 = vadd.f32 %v63, %v248
    %v305 = vadd.f32 %v64, %v251
    %v306 = vadd.f32 %v65, %v256
    %v307 = vadd.f32 %v66, %v259
    %v308 = vadd.f32 %v67, %v264
    %v309 = vadd.f32 %v68, %v267
    %v310 = vadd.f32 %v69, %v272
    %v311 = vadd.f32 %v70, %v275
    %v312 = vadd.f32 %v71, %v280
    %v313 = vadd.f32 %v72, %v283
    %v314 = vadd.f32 %v73, %v288
    %v315 = vadd.f32 %v74, %v291
    %v316 = vadd.f32 %v75, %v296
    %v317 = vadd.f32 %v76, %v299
    %318 = vst [vmem:[#allocation2] sm:$0xff] %v302
    %319 = vst [vmem:[#allocation2 + $0x8] sm:$0xff] %v303
    %320 = vst [vmem:[#allocation2 + $0x10] sm:$0xff] %v304
    %321 = vst [vmem:[#allocation2 + $0x18] sm:$0xff] %v305
    %322 = vst [vmem:[#allocation2 + $0x20] sm:$0xff] %v306
    %323 = vst [vmem:[#allocation2 + $0x28] sm:$0xff] %v307
    %324 = vst [vmem:[#allocation2 + $0x30] sm:$0xff] %v308
    %325 = vst [vmem:[#allocation2 + $0x38] sm:$0xff] %v309
    %326 = vst [vmem:[#allocation2 + $0x40] sm:$0xff] %v310
    %327 = vst [vmem:[#allocation2 + $0x48] sm:$0xff] %v311
    %328 = vst [vmem:[#allocation2 + $0x50] sm:$0xff] %v312
    %329 = vst [vmem:[#allocation2 + $0x58] sm:$0xff] %v313
    %330 = vst [vmem:[#allocation2 + $0x60] sm:$0xff] %v314
    %331 = vst [vmem:[#allocation2 + $0x68] sm:$0xff] %v315
    %332 = vst [vmem:[#allocation2 + $0x70] sm:$0xff] %v316
    %333 = vst [vmem:[#allocation2 + $0x78] sm:$0xff] %v317
    // Predicated region
    $region22: #{plain_gnn_forward.8} parent=1 // pred_check
      %p334 = pneg %p41
    $region23: #{plain_gnn_forward.8} parent=1 // pred_check_branch
      %336 = sbr.rel (%p334) target = $region25
    $region24: #{plain_gnn_forward.8} parent=1 // pred_region
      %v337 = vld [vmem:[#allocation2] sm:$0xff]
      %v338 = vld [vmem:[#allocation2 + $0x8] sm:$0xff]
      %v339 = vld [vmem:[#allocation2 + $0x10] sm:$0xff]
      %v340 = vld [vmem:[#allocation2 + $0x18] sm:$0xff]
      %v341 = vld [vmem:[#allocation2 + $0x20] sm:$0xff]
      %v342 = vld [vmem:[#allocation2 + $0x28] sm:$0xff]
      %v343 = vld [vmem:[#allocation2 + $0x30] sm:$0xff]
      %v344 = vld [vmem:[#allocation2 + $0x38] sm:$0xff]
      %v345 = vld [vmem:[#allocation2 + $0x40] sm:$0xff]
      %v346 = vld [vmem:[#allocation2 + $0x48] sm:$0xff]
      %v347 = vld [vmem:[#allocation2 + $0x50] sm:$0xff]
      %v348 = vld [vmem:[#allocation2 + $0x58] sm:$0xff]
      %v349 = vld [vmem:[#allocation2 + $0x60] sm:$0xff]
      %v350 = vld [vmem:[#allocation2 + $0x68] sm:$0xff]
      %v351 = vld [vmem:[#allocation2 + $0x70] sm:$0xff]
      %v352 = vld [vmem:[#allocation2 + $0x78] sm:$0xff]
      %v353 = vpack.c.bf16 %v338, %v337
      %v354 = vpack.c.bf16 %v340, %v339
      %v355 = vpack.c.bf16 %v342, %v341
      %v356 = vpack.c.bf16 %v344, %v343
      %v357 = vpack.c.bf16 %v346, %v345
      %v358 = vpack.c.bf16 %v348, %v347
      %v359 = vpack.c.bf16 %v350, %v349
      %v360 = vpack.c.bf16 %v352, %v351
      %v369 = vunpack.c.l.b16 %v353
      %v370 = vunpack.c.h.b16 %v353
      %v371 = vunpack.c.l.b16 %v354
      %v372 = vunpack.c.h.b16 %v354
      %v373 = vunpack.c.l.b16 %v355
      %v374 = vunpack.c.h.b16 %v355
      %v375 = vunpack.c.l.b16 %v356
      %v376 = vunpack.c.h.b16 %v356
      %v377 = vunpack.c.l.b16 %v357
      %v378 = vunpack.c.h.b16 %v357
      %v379 = vunpack.c.l.b16 %v358
      %v380 = vunpack.c.h.b16 %v358
      %v381 = vunpack.c.l.b16 %v359
      %v382 = vunpack.c.h.b16 %v359
      %v383 = vunpack.c.l.b16 %v360
      %v384 = vunpack.c.h.b16 %v360
      %v385 = vpack.c.b16 %v369, %v369
      %v386 = vpack.c.b16 %v370, %v370
      %v387 = vpack.c.b16 %v371, %v371
      %v388 = vpack.c.b16 %v372, %v372
      %v389 = vpack.c.b16 %v373, %v373
      %v390 = vpack.c.b16 %v374, %v374
      %v391 = vpack.c.b16 %v375, %v375
      %v392 = vpack.c.b16 %v376, %v376
      %v393 = vpack.c.b16 %v377, %v377
      %v394 = vpack.c.b16 %v378, %v378
      %v395 = vpack.c.b16 %v379, %v379
      %v396 = vpack.c.b16 %v380, %v380
      %v397 = vpack.c.b16 %v381, %v381
      %v398 = vpack.c.b16 %v382, %v382
      %v399 = vpack.c.b16 %v383, %v383
      %v400 = vpack.c.b16 %v384, %v384
      %417 = vst [vmem:[#allocation8] sm:$0xf] %v385
      %418 = vst [vmem:[#allocation8 + $0x4] sm:$0xf] %v386
      %419 = vst [vmem:[#allocation8 + $0x8] sm:$0xf] %v387
      %420 = vst [vmem:[#allocation8 + $0xc] sm:$0xf] %v388
      %421 = vst [vmem:[#allocation8 + $0x10] sm:$0xf] %v389
      %422 = vst [vmem:[#allocation8 + $0x14] sm:$0xf] %v390
      %423 = vst [vmem:[#allocation8 + $0x18] sm:$0xf] %v391
      %424 = vst [vmem:[#allocation8 + $0x1c] sm:$0xf] %v392
      %425 = vst [vmem:[#allocation8 + $0x20] sm:$0xf] %v393
      %426 = vst [vmem:[#allocation8 + $0x24] sm:$0xf] %v394
      %427 = vst [vmem:[#allocation8 + $0x28] sm:$0xf] %v395
      %428 = vst [vmem:[#allocation8 + $0x2c] sm:$0xf] %v396
      %429 = vst [vmem:[#allocation8 + $0x30] sm:$0xf] %v397
      %430 = vst [vmem:[#allocation8 + $0x34] sm:$0xf] %v398
      %431 = vst [vmem:[#allocation8 + $0x38] sm:$0xf] %v399
      %432 = vst [vmem:[#allocation8 + $0x3c] sm:$0xf] %v400
    $region25: #{plain_gnn_forward.8} parent=1 // pred_fallthru
      _
    // Predicated region
    $region26: #{plain_gnn_forward.8} parent=1 // pred_check
      _
    $region27: #{plain_gnn_forward.8} parent=1 // pred_check_branch
      %434 = sbr.rel (0) target = $region29
    $region28: #{plain_gnn_forward.8} parent=1 // pred_region
      %s436 = ssub.s32 1024, 1024
      %437 = vsyncadd [#allocation5], %s436
      %s438 = sshll.u32 [#allocation8], 4
      %s439 = int_to_ptr.vmem [resolvable:$true] %s438
      %444 = dma.vmem_to_hbm [thread:$0]  %s439, 1024, %s2, [#allocation5], 64, 64, 4
    $region29: #{plain_gnn_forward.8} parent=1 // pred_fallthru
      _
    // Predicated region
    $region30: #{plain_gnn_forward.8} parent=1 // pred_check
      _
    $region31: #{plain_gnn_forward.8} parent=1 // pred_check_branch
      %446 = sbr.rel (0) target = $region33
    $region32: #{plain_gnn_forward.8} parent=1 // pred_region
      %447 = dma.done [#allocation5], 1024
    $region33: #{plain_gnn_forward.8} parent=1 // pred_fallthru
      _
    %448 = vsyncpa [#allocation4], 1
    %449 = vsyncpa [#allocation7], 1
    %450 = vsyncpa [#allocation5], 1

// kernel: plain_gnn_forward.9
$region0: #{plain_gnn_forward.9}
  #allocation0 [shape = 'u32[]', space=smem, size = 0x4, offset = 0x4, fixed_abs, tag = 'smem constant byte address 0x4 - core index']
  #allocation1 [shape = 'u32[144,128]{1,0:T(1,128)}', space=vmem, size = 0x12000, scoped, tag = 'internal scratch']
  #allocation2 [shape = 'f32[128,128]{1,0:T(8,128)}', space=vmem, size = 0x10000, scoped, tag = 'scratch operand']
  %s0 = inlined_call_operand.hbm [shape: bf16[128,128], index: 0, kind: input, shape index: {}]
  %s1 = inlined_call_operand.hbm [shape: bf16[128,128], index: 1, kind: input, shape index: {}]
  %s2 = inlined_call_operand.hbm [shape: f32[1,128], index: 2, kind: input, shape index: {}]
  %s3 = inlined_call_operand.hbm [shape: bf16[128,128], index: 3, kind: output, shape index: {}]
  %s4 = sld [smem:[#allocation0]]
  $region42: #{plain_gnn_forward.9} parent=0
    _
  %s6 = ssub.s32 1, %s4
  %s7 = scalar_select 0, %s6, %s4
  $region1: #{plain_gnn_forward.9} parent=0
    #allocation3 [shape = 'u8[32768]{0}', space=vmem, size = 0x8000, scoped, tag = 'input window, operand 0, single buffered']
    #allocation4 [shape = 's32[1]{0}', space=sflag, size = 0x4, scoped, tag = 'scoped memory for plain_gnn_forward.9']
    #allocation5 [shape = 's32[1]{0}', space=sflag, size = 0x4, scoped, tag = 'scoped memory for plain_gnn_forward.9']
    #allocation6 [shape = 'u8[32768]{0}', space=vmem, size = 0x8000, scoped, tag = 'input window, operand 1, single buffered']
    #allocation7 [shape = 's32[1]{0}', space=sflag, size = 0x4, scoped, tag = 'scoped memory for plain_gnn_forward.9']
    #allocation8 [shape = 'u8[512]{0}', space=vmem, size = 0x400, scoped, tag = 'input window, operand 2, single buffered']
    #allocation9 [shape = 'u8[32768]{0}', space=vmem, size = 0x8000, scoped, tag = 'output window, operand 0, single buffered']
    %8 = vsyncpa [#allocation4], 0
    %9 = vsyncpa [#allocation7], 0
    %10 = vsyncpa [#allocation5], 0
    // Predicated region
    $region2: #{plain_gnn_forward.9} parent=1 // pred_check
      _
    $region3: #{plain_gnn_forward.9} parent=1 // pred_check_branch
      %12 = sbr.rel (0) target = $region5
    $region4: #{plain_gnn_forward.9} parent=1 // pred_region
      %s14 = ssub.s32 1024, 1024
      %15 = vsyncadd [#allocation4], %s14
      %s16 = sshll.u32 [#allocation3], 4
      %s17 = int_to_ptr.vmem [resolvable:$true] %s16
      %22 = dma.hbm_to_vmem [thread:$0]  %s0, 1024, %s17, [#allocation4], 64, 64, 4
    $region5: #{plain_gnn_forward.9} parent=1 // pred_fallthru
      _
    // Predicated region
    $region6: #{plain_gnn_forward.9} parent=1 // pred_check
      _
    $region7: #{plain_gnn_forward.9} parent=1 // pred_check_branch
      %24 = sbr.rel (0) target = $region9
    $region8: #{plain_gnn_forward.9} parent=1 // pred_region
      %s26 = ssub.s32 1024, 1024
      %27 = vsyncadd [#allocation7], %s26
      %s28 = sshll.u32 [#allocation6], 4
      %s29 = int_to_ptr.vmem [resolvable:$true] %s28
      %34 = dma.hbm_to_vmem [thread:$0]  %s1, 1024, %s29, [#allocation7], 64, 64, 4
    $region9: #{plain_gnn_forward.9} parent=1 // pred_fallthru
      _
    // Predicated region
    $region10: #{plain_gnn_forward.9} parent=1 // pred_check
      _
    $region11: #{plain_gnn_forward.9} parent=1 // pred_check_branch
      %36 = sbr.rel (0) target = $region13
    $region12: #{plain_gnn_forward.9} parent=1 // pred_region
      %s38 = ssub.s32 16, 16
      %39 = vsyncadd [#allocation7], %s38
      %s41 = sshll.u32 [#allocation8], 4
      %s42 = int_to_ptr.vmem [resolvable:$true] %s41
      %44 = dma.hbm_to_vmem [thread:$0]  %s2, 16, %s42, [#allocation7]
    $region13: #{plain_gnn_forward.9} parent=1 // pred_fallthru
      _
    // Predicated region
    $region14: #{plain_gnn_forward.9} parent=1 // pred_check
      _
    $region15: #{plain_gnn_forward.9} parent=1 // pred_check_branch
      %46 = sbr.rel (0) target = $region17
    $region16: #{plain_gnn_forward.9} parent=1 // pred_region
      %47 = dma.done [#allocation4], 1024
    $region17: #{plain_gnn_forward.9} parent=1 // pred_fallthru
      _
    // Predicated region
    $region18: #{plain_gnn_forward.9} parent=1 // pred_check
      _
    $region19: #{plain_gnn_forward.9} parent=1 // pred_check_branch
      %49 = sbr.rel (0) target = $region21
    $region20: #{plain_gnn_forward.9} parent=1 // pred_region
      %50 = dma.done [#allocation7], 1024
    $region21: #{plain_gnn_forward.9} parent=1 // pred_fallthru
      _
    // Predicated region
    $region22: #{plain_gnn_forward.9} parent=1 // pred_check
      _
    $region23: #{plain_gnn_forward.9} parent=1 // pred_check_branch
      %52 = sbr.rel (0) target = $region25
    $region24: #{plain_gnn_forward.9} parent=1 // pred_region
      %53 = dma.done [#allocation7], 16
    $region25: #{plain_gnn_forward.9} parent=1 // pred_fallthru
      _
    %p55 = scmp.eq.s32.totalorder 0, 0
    // Predicated region
    $region26: #{plain_gnn_forward.9} parent=1 // pred_check
      %p56 = pneg %p55
    $region27: #{plain_gnn_forward.9} parent=1 // pred_check_branch
      %58 = sbr.rel (%p56) target = $region29
    $region28: #{plain_gnn_forward.9} parent=1 // pred_region
      %59 = vst [vmem:[#allocation2] sm:$0xff] 0.0
      %60 = vst [vmem:[#allocation2 + $0x8] sm:$0xff] 0.0
      %61 = vst [vmem:[#allocation2 + $0x10] sm:$0xff] 0.0
      %62 = vst [vmem:[#allocation2 + $0x18] sm:$0xff] 0.0
      %63 = vst [vmem:[#allocation2 + $0x20] sm:$0xff] 0.0
      %64 = vst [vmem:[#allocation2 + $0x28] sm:$0xff] 0.0
      %65 = vst [vmem:[#allocation2 + $0x30] sm:$0xff] 0.0
      %66 = vst [vmem:[#allocation2 + $0x38] sm:$0xff] 0.0
      %67 = vst [vmem:[#allocation2 + $0x40] sm:$0xff] 0.0
      %68 = vst [vmem:[#allocation2 + $0x48] sm:$0xff] 0.0
      %69 = vst [vmem:[#allocation2 + $0x50] sm:$0xff] 0.0
      %70 = vst [vmem:[#allocation2 + $0x58] sm:$0xff] 0.0
      %71 = vst [vmem:[#allocation2 + $0x60] sm:$0xff] 0.0
      %72 = vst [vmem:[#allocation2 + $0x68] sm:$0xff] 0.0
      %73 = vst [vmem:[#allocation2 + $0x70] sm:$0xff] 0.0
      %74 = vst [vmem:[#allocation2 + $0x78] sm:$0xff] 0.0
    $region29: #{plain_gnn_forward.9} parent=1 // pred_fallthru
      _
    %v75 = vld [vmem:[#allocation2] sm:$0xff]
    %v76 = vld [vmem:[#allocation2 + $0x8] sm:$0xff]
    %v77 = vld [vmem:[#allocation2 + $0x10] sm:$0xff]
    %v78 = vld [vmem:[#allocation2 + $0x18] sm:$0xff]
    %v79 = vld [vmem:[#allocation2 + $0x20] sm:$0xff]
    %v80 = vld [vmem:[#allocation2 + $0x28] sm:$0xff]
    %v81 = vld [vmem:[#allocation2 + $0x30] sm:$0xff]
    %v82 = vld [vmem:[#allocation2 + $0x38] sm:$0xff]
    %v83 = vld [vmem:[#allocation2 + $0x40] sm:$0xff]
    %v84 = vld [vmem:[#allocation2 + $0x48] sm:$0xff]
    %v85 = vld [vmem:[#allocation2 + $0x50] sm:$0xff]
    %v86 = vld [vmem:[#allocation2 + $0x58] sm:$0xff]
    %v87 = vld [vmem:[#allocation2 + $0x60] sm:$0xff]
    %v88 = vld [vmem:[#allocation2 + $0x68] sm:$0xff]
    %v89 = vld [vmem:[#allocation2 + $0x70] sm:$0xff]
    %v90 = vld [vmem:[#allocation2 + $0x78] sm:$0xff]
    %v91 = vld [vmem:[#allocation3] sm:$0xf]
    %v92 = vld [vmem:[#allocation3 + $0x4] sm:$0xf]
    %v93 = vld [vmem:[#allocation3 + $0x8] sm:$0xf]
    %v94 = vld [vmem:[#allocation3 + $0xc] sm:$0xf]
    %v95 = vld [vmem:[#allocation3 + $0x10] sm:$0xf]
    %v96 = vld [vmem:[#allocation3 + $0x14] sm:$0xf]
    %v97 = vld [vmem:[#allocation3 + $0x18] sm:$0xf]
    %v98 = vld [vmem:[#allocation3 + $0x1c] sm:$0xf]
    %v99 = vld [vmem:[#allocation3 + $0x20] sm:$0xf]
    %v100 = vld [vmem:[#allocation3 + $0x24] sm:$0xf]
    %v101 = vld [vmem:[#allocation3 + $0x28] sm:$0xf]
    %v102 = vld [vmem:[#allocation3 + $0x2c] sm:$0xf]
    %v103 = vld [vmem:[#allocation3 + $0x30] sm:$0xf]
    %v104 = vld [vmem:[#allocation3 + $0x34] sm:$0xf]
    %v105 = vld [vmem:[#allocation3 + $0x38] sm:$0xf]
    %v106 = vld [vmem:[#allocation3 + $0x3c] sm:$0xf]
    %v107 = vld [vmem:[#allocation6] sm:$0xf]
    %v108 = vld [vmem:[#allocation6 + $0x4] sm:$0xf]
    %v109 = vld [vmem:[#allocation6 + $0x8] sm:$0xf]
    %v110 = vld [vmem:[#allocation6 + $0xc] sm:$0xf]
    %v111 = vld [vmem:[#allocation6 + $0x10] sm:$0xf]
    %v112 = vld [vmem:[#allocation6 + $0x14] sm:$0xf]
    %v113 = vld [vmem:[#allocation6 + $0x18] sm:$0xf]
    %v114 = vld [vmem:[#allocation6 + $0x1c] sm:$0xf]
    %v115 = vld [vmem:[#allocation6 + $0x20] sm:$0xf]
    %v116 = vld [vmem:[#allocation6 + $0x24] sm:$0xf]
    %v117 = vld [vmem:[#allocation6 + $0x28] sm:$0xf]
    %v118 = vld [vmem:[#allocation6 + $0x2c] sm:$0xf]
    %v119 = vld [vmem:[#allocation6 + $0x30] sm:$0xf]
    %v120 = vld [vmem:[#allocation6 + $0x34] sm:$0xf]
    %v121 = vld [vmem:[#allocation6 + $0x38] sm:$0xf]
    %v122 = vld [vmem:[#allocation6 + $0x3c] sm:$0xf]
    %v139 = vunpack.c.l.b16 %v91
    %v140 = vunpack.c.l.b16 %v92
    %v141 = vunpack.c.l.b16 %v93
    %v142 = vunpack.c.l.b16 %v94
    %v143 = vunpack.c.l.b16 %v95
    %v144 = vunpack.c.l.b16 %v96
    %v145 = vunpack.c.l.b16 %v97
    %v146 = vunpack.c.l.b16 %v98
    %v147 = vunpack.c.l.b16 %v99
    %v148 = vunpack.c.l.b16 %v100
    %v149 = vunpack.c.l.b16 %v101
    %v150 = vunpack.c.l.b16 %v102
    %v151 = vunpack.c.l.b16 %v103
    %v152 = vunpack.c.l.b16 %v104
    %v153 = vunpack.c.l.b16 %v105
    %v154 = vunpack.c.l.b16 %v106
    %v155 = vpack.c.b16 %v140, %v139
    %v156 = vpack.c.b16 %v142, %v141
    %v157 = vpack.c.b16 %v144, %v143
    %v158 = vpack.c.b16 %v146, %v145
    %v159 = vpack.c.b16 %v148, %v147
    %v160 = vpack.c.b16 %v150, %v149
    %v161 = vpack.c.b16 %v152, %v151
    %v162 = vpack.c.b16 %v154, %v153
    %v187 = vunpack.c.l.b16 %v107
    %v188 = vunpack.c.l.b16 %v108
    %v189 = vunpack.c.l.b16 %v109
    %v190 = vunpack.c.l.b16 %v110
    %v191 = vunpack.c.l.b16 %v111
    %v192 = vunpack.c.l.b16 %v112
    %v193 = vunpack.c.l.b16 %v113
    %v194 = vunpack.c.l.b16 %v114
    %v195 = vunpack.c.l.b16 %v115
    %v196 = vunpack.c.l.b16 %v116
    %v197 = vunpack.c.l.b16 %v117
    %v198 = vunpack.c.l.b16 %v118
    %v199 = vunpack.c.l.b16 %v119
    %v200 = vunpack.c.l.b16 %v120
    %v201 = vunpack.c.l.b16 %v121
    %v202 = vunpack.c.l.b16 %v122
    %v203 = vpack.c.b16 %v188, %v187
    %v204 = vpack.c.b16 %v190, %v189
    %v205 = vpack.c.b16 %v192, %v191
    %v206 = vpack.c.b16 %v194, %v193
    %v207 = vpack.c.b16 %v196, %v195
    %v208 = vpack.c.b16 %v198, %v197
    %v209 = vpack.c.b16 %v200, %v199
    %v210 = vpack.c.b16 %v202, %v201
    %219 = vmatprep.subr.bf16.mxu0 0
    %220 = vmatpush1.bf16.msra.mxu0 %v203
    %221 = vmatprep.subr.bf16.mxu0 0
    %222 = vmatpush1.bf16.msra.mxu0 %v204
    %223 = vmatprep.subr.bf16.mxu0 0
    %224 = vmatpush1.bf16.msra.mxu0 %v205
    %225 = vmatprep.subr.bf16.mxu0 0
    %226 = vmatpush1.bf16.msra.mxu0 %v206
    %227 = vmatprep.subr.bf16.mxu0 0
    %228 = vmatpush1.bf16.msra.mxu0 %v207
    %229 = vmatprep.subr.bf16.mxu0 0
    %230 = vmatpush1.bf16.msra.mxu0 %v208
    %231 = vmatprep.subr.bf16.mxu0 0
    %232 = vmatpush1.bf16.msra.mxu0 %v209
    %233 = vmatprep.subr.bf16.mxu0 0
    %234 = vmatpush1.bf16.msra.mxu0 %v210
    %235 = vmatprep.subr.bf16.mxu0 0
    %236 = vmatpush1.bf16.msra.mxu0 0
    %237 = vmatprep.subr.bf16.mxu0 0
    %238 = vmatpush1.bf16.msra.mxu0 0
    %239 = vmatprep.subr.bf16.mxu0 0
    %240 = vmatpush1.bf16.msra.mxu0 0
    %241 = vmatprep.subr.bf16.mxu0 0
    %242 = vmatpush1.bf16.msra.mxu0 0
    %243 = vmatprep.subr.bf16.mxu0 0
    %244 = vmatpush1.bf16.msra.mxu0 0
    %245 = vmatprep.subr.bf16.mxu0 0
    %246 = vmatpush1.bf16.msra.mxu0 0
    %247 = vmatprep.subr.bf16.mxu0 0
    %248 = vmatpush1.bf16.msra.mxu0 0
    %249 = vmatprep.subr.bf16.mxu0 0
    %250 = vmatpush1.bf16.msra.mxu0 0
    %251 = vmatprep.mubr.bf16.mxu0 0
    %252 = vmatmul.mubr.bf16.gmra.mrb[0].mxu0 %v155
    %v253 = vpop.f32.mrb[0].mxu0
    %v254 = vadd.f32 0.0, %v253
    %v255 = vpop.f32.mrb[0].mxu0
    %v256 = vpop.f32.mrb[0].mxu0
    %v257 = vadd.f32 0.0, %v256
    %v258 = vpop.f32.mrb[0].mxu0
    %259 = vmatprep.mubr.bf16.mxu0 0
    %260 = vmatmul.mubr.bf16.gmra.mrb[0].mxu0 %v156
    %v261 = vpop.f32.mrb[0].mxu0
    %v262 = vadd.f32 0.0, %v261
    %v263 = vpop.f32.mrb[0].mxu0
    %v264 = vpop.f32.mrb[0].mxu0
    %v265 = vadd.f32 0.0, %v264
    %v266 = vpop.f32.mrb[0].mxu0
    %267 = vmatprep.mubr.bf16.mxu0 0
    %268 = vmatmul.mubr.bf16.gmra.mrb[0].mxu0 %v157
    %v269 = vpop.f32.mrb[0].mxu0
    %v270 = vadd.f32 0.0, %v269
    %v271 = vpop.f32.mrb[0].mxu0
    %v272 = vpop.f32.mrb[0].mxu0
    %v273 = vadd.f32 0.0, %v272
    %v274 = vpop.f32.mrb[0].mxu0
    %275 = vmatprep.mubr.bf16.mxu0 0
    %276 = vmatmul.mubr.bf16.gmra.mrb[0].mxu0 %v158
    %v277 = vpop.f32.mrb[0].mxu0
    %v278 = vadd.f32 0.0, %v277
    %v279 = vpop.f32.mrb[0].mxu0
    %v280 = vpop.f32.mrb[0].mxu0
    %v281 = vadd.f32 0.0, %v280
    %v282 = vpop.f32.mrb[0].mxu0
    %283 = vmatprep.mubr.bf16.mxu0 0
    %284 = vmatmul.mubr.bf16.gmra.mrb[0].mxu0 %v159
    %v285 = vpop.f32.mrb[0].mxu0
    %v286 = vadd.f32 0.0, %v285
    %v287 = vpop.f32.mrb[0].mxu0
    %v288 = vpop.f32.mrb[0].mxu0
    %v289 = vadd.f32 0.0, %v288
    %v290 = vpop.f32.mrb[0].mxu0
    %291 = vmatprep.mubr.bf16.mxu0 0
    %292 = vmatmul.mubr.bf16.gmra.mrb[0].mxu0 %v160
    %v293 = vpop.f32.mrb[0].mxu0
    %v294 = vadd.f32 0.0, %v293
    %v295 = vpop.f32.mrb[0].mxu0
    %v296 = vpop.f32.mrb[0].mxu0
    %v297 = vadd.f32 0.0, %v296
    %v298 = vpop.f32.mrb[0].mxu0
    %299 = vmatprep.mubr.bf16.mxu0 0
    %300 = vmatmul.mubr.bf16.gmra.mrb[0].mxu0 %v161
    %v301 = vpop.f32.mrb[0].mxu0
    %v302 = vadd.f32 0.0, %v301
    %v303 = vpop.f32.mrb[0].mxu0
    %v304 = vpop.f32.mrb[0].mxu0
    %v305 = vadd.f32 0.0, %v304
    %v306 = vpop.f32.mrb[0].mxu0
    %307 = vmatprep.mubr.bf16.mxu0 0
    %308 = vmatmul.mubr.bf16.gmra.mrb[0].mxu0 %v162
    %v309 = vpop.f32.mrb[0].mxu0
    %v310 = vadd.f32 0.0, %v309
    %v311 = vpop.f32.mrb[0].mxu0
    %v312 = vpop.f32.mrb[0].mxu0
    %v313 = vadd.f32 0.0, %v312
    %v314 = vpop.f32.mrb[0].mxu0
    %315 = vdwg.mxu0
    %v316 = vadd.f32 %v75, %v254
    %v317 = vadd.f32 %v76, %v257
    %v318 = vadd.f32 %v77, %v262
    %v319 = vadd.f32 %v78, %v265
    %v320 = vadd.f32 %v79, %v270
    %v321 = vadd.f32 %v80, %v273
    %v322 = vadd.f32 %v81, %v278
    %v323 = vadd.f32 %v82, %v281
    %v324 = vadd.f32 %v83, %v286
    %v325 = vadd.f32 %v84, %v289
    %v326 = vadd.f32 %v85, %v294
    %v327 = vadd.f32 %v86, %v297
    %v328 = vadd.f32 %v87, %v302
    %v329 = vadd.f32 %v88, %v305
    %v330 = vadd.f32 %v89, %v310
    %v331 = vadd.f32 %v90, %v313
    %332 = vst [vmem:[#allocation2] sm:$0xff] %v316
    %333 = vst [vmem:[#allocation2 + $0x8] sm:$0xff] %v317
    %334 = vst [vmem:[#allocation2 + $0x10] sm:$0xff] %v318
    %335 = vst [vmem:[#allocation2 + $0x18] sm:$0xff] %v319
    %336 = vst [vmem:[#allocation2 + $0x20] sm:$0xff] %v320
    %337 = vst [vmem:[#allocation2 + $0x28] sm:$0xff] %v321
    %338 = vst [vmem:[#allocation2 + $0x30] sm:$0xff] %v322
    %339 = vst [vmem:[#allocation2 + $0x38] sm:$0xff] %v323
    %340 = vst [vmem:[#allocation2 + $0x40] sm:$0xff] %v324
    %341 = vst [vmem:[#allocation2 + $0x48] sm:$0xff] %v325
    %342 = vst [vmem:[#allocation2 + $0x50] sm:$0xff] %v326
    %343 = vst [vmem:[#allocation2 + $0x58] sm:$0xff] %v327
    %344 = vst [vmem:[#allocation2 + $0x60] sm:$0xff] %v328
    %345 = vst [vmem:[#allocation2 + $0x68] sm:$0xff] %v329
    %346 = vst [vmem:[#allocation2 + $0x70] sm:$0xff] %v330
    %347 = vst [vmem:[#allocation2 + $0x78] sm:$0xff] %v331
    // Predicated region
    $region30: #{plain_gnn_forward.9} parent=1 // pred_check
      %p348 = pneg %p55
    $region31: #{plain_gnn_forward.9} parent=1 // pred_check_branch
      %350 = sbr.rel (%p348) target = $region33
    $region32: #{plain_gnn_forward.9} parent=1 // pred_region
      %v351 = vld [vmem:[#allocation2] sm:$0xff]
      %v352 = vld [vmem:[#allocation2 + $0x8] sm:$0xff]
      %v353 = vld [vmem:[#allocation2 + $0x10] sm:$0xff]
      %v354 = vld [vmem:[#allocation2 + $0x18] sm:$0xff]
      %v355 = vld [vmem:[#allocation2 + $0x20] sm:$0xff]
      %v356 = vld [vmem:[#allocation2 + $0x28] sm:$0xff]
      %v357 = vld [vmem:[#allocation2 + $0x30] sm:$0xff]
      %v358 = vld [vmem:[#allocation2 + $0x38] sm:$0xff]
      %v359 = vld [vmem:[#allocation2 + $0x40] sm:$0xff]
      %v360 = vld [vmem:[#allocation2 + $0x48] sm:$0xff]
      %v361 = vld [vmem:[#allocation2 + $0x50] sm:$0xff]
      %v362 = vld [vmem:[#allocation2 + $0x58] sm:$0xff]
      %v363 = vld [vmem:[#allocation2 + $0x60] sm:$0xff]
      %v364 = vld [vmem:[#allocation2 + $0x68] sm:$0xff]
      %v365 = vld [vmem:[#allocation2 + $0x70] sm:$0xff]
      %v366 = vld [vmem:[#allocation2 + $0x78] sm:$0xff]
      %v367 = vld [vmem:[#allocation8] sm:$0x1]
      %v369 = vlaneseq
      %v370 = vshrl.u32 %v369, 7
      %v371 = vsub.s32 0, %v370
      %v372 = vrot.slane %v367, %v371
      %v374 = vadd.f32 %v351, %v372
      %v375 = vadd.f32 %v352, %v372
      %v376 = vadd.f32 %v353, %v372
      %v377 = vadd.f32 %v354, %v372
      %v378 = vadd.f32 %v355, %v372
      %v379 = vadd.f32 %v356, %v372
      %v380 = vadd.f32 %v357, %v372
      %v381 = vadd.f32 %v358, %v372
      %v382 = vadd.f32 %v359, %v372
      %v383 = vadd.f32 %v360, %v372
      %v384 = vadd.f32 %v361, %v372
      %v385 = vadd.f32 %v362, %v372
      %v386 = vadd.f32 %v363, %v372
      %v387 = vadd.f32 %v364, %v372
      %v388 = vadd.f32 %v365, %v372
      %v389 = vadd.f32 %v366, %v372
      %v390 = vmax.f32 %v374, 0.0
      %v391 = vmax.f32 %v375, 0.0
      %v392 = vmax.f32 %v376, 0.0
      %v393 = vmax.f32 %v377, 0.0
      %v394 = vmax.f32 %v378, 0.0
      %v395 = vmax.f32 %v379, 0.0
      %v396 = vmax.f32 %v380, 0.0
      %v397 = vmax.f32 %v381, 0.0
      %v398 = vmax.f32 %v382, 0.0
      %v399 = vmax.f32 %v383, 0.0
      %v400 = vmax.f32 %v384, 0.0
      %v401 = vmax.f32 %v385, 0.0
      %v402 = vmax.f32 %v386, 0.0
      %v403 = vmax.f32 %v387, 0.0
      %v404 = vmax.f32 %v388, 0.0
      %v405 = vmax.f32 %v389, 0.0
      %v406 = vpack.c.bf16 %v391, %v390
      %v407 = vpack.c.bf16 %v393, %v392
      %v408 = vpack.c.bf16 %v395, %v394
      %v409 = vpack.c.bf16 %v397, %v396
      %v410 = vpack.c.bf16 %v399, %v398
      %v411 = vpack.c.bf16 %v401, %v400
      %v412 = vpack.c.bf16 %v403, %v402
      %v413 = vpack.c.bf16 %v405, %v404
      %v422 = vunpack.c.l.b16 %v406
      %v423 = vunpack.c.h.b16 %v406
      %v424 = vunpack.c.l.b16 %v407
      %v425 = vunpack.c.h.b16 %v407
      %v426 = vunpack.c.l.b16 %v408
      %v427 = vunpack.c.h.b16 %v408
      %v428 = vunpack.c.l.b16 %v409
      %v429 = vunpack.c.h.b16 %v409
      %v430 = vunpack.c.l.b16 %v410
      %v431 = vunpack.c.h.b16 %v410
      %v432 = vunpack.c.l.b16 %v411
      %v433 = vunpack.c.h.b16 %v411
      %v434 = vunpack.c.l.b16 %v412
      %v435 = vunpack.c.h.b16 %v412
      %v436 = vunpack.c.l.b16 %v413
      %v437 = vunpack.c.h.b16 %v413
      %v438 = vpack.c.b16 %v422, %v422
      %v439 = vpack.c.b16 %v423, %v423
      %v440 = vpack.c.b16 %v424, %v424
      %v441 = vpack.c.b16 %v425, %v425
      %v442 = vpack.c.b16 %v426, %v426
      %v443 = vpack.c.b16 %v427, %v427
      %v444 = vpack.c.b16 %v428, %v428
      %v445 = vpack.c.b16 %v429, %v429
      %v446 = vpack.c.b16 %v430, %v430
      %v447 = vpack.c.b16 %v431, %v431
      %v448 = vpack.c.b16 %v432, %v432
      %v449 = vpack.c.b16 %v433, %v433
      %v450 = vpack.c.b16 %v434, %v434
      %v451 = vpack.c.b16 %v435, %v435
      %v452 = vpack.c.b16 %v436, %v436
      %v453 = vpack.c.b16 %v437, %v437
      %470 = vst [vmem:[#allocation9] sm:$0xf] %v438
      %471 = vst [vmem:[#allocation9 + $0x4] sm:$0xf] %v439
      %472 = vst [vmem:[#allocation9 + $0x8] sm:$0xf] %v440
      %473 = vst [vmem:[#allocation9 + $0xc] sm:$0xf] %v441
      %474 = vst [vmem:[#allocation9 + $0x10] sm:$0xf] %v442
      %475 = vst [vmem:[#allocation9 + $0x14] sm:$0xf] %v443
      %476 = vst [vmem:[#allocation9 + $0x18] sm:$0xf] %v444
      %477 = vst [vmem:[#allocation9 + $0x1c] sm:$0xf] %v445
      %478 = vst [vmem:[#allocation9 + $0x20] sm:$0xf] %v446
      %479 = vst [vmem:[#allocation9 + $0x24] sm:$0xf] %v447
      %480 = vst [vmem:[#allocation9 + $0x28] sm:$0xf] %v448
      %481 = vst [vmem:[#allocation9 + $0x2c] sm:$0xf] %v449
      %482 = vst [vmem:[#allocation9 + $0x30] sm:$0xf] %v450
      %483 = vst [vmem:[#allocation9 + $0x34] sm:$0xf] %v451
      %484 = vst [vmem:[#allocation9 + $0x38] sm:$0xf] %v452
      %485 = vst [vmem:[#allocation9 + $0x3c] sm:$0xf] %v453
    $region33: #{plain_gnn_forward.9} parent=1 // pred_fallthru
      _
    // Predicated region
    $region34: #{plain_gnn_forward.9} parent=1 // pred_check
      _
    $region35: #{plain_gnn_forward.9} parent=1 // pred_check_branch
      %487 = sbr.rel (0) target = $region37
    $region36: #{plain_gnn_forward.9} parent=1 // pred_region
      %s489 = ssub.s32 1024, 1024
      %490 = vsyncadd [#allocation5], %s489
      %s491 = sshll.u32 [#allocation9], 4
      %s492 = int_to_ptr.vmem [resolvable:$true] %s491
      %497 = dma.vmem_to_hbm [thread:$0]  %s492, 1024, %s3, [#allocation5], 64, 64, 4
    $region37: #{plain_gnn_forward.9} parent=1 // pred_fallthru
      _
    // Predicated region
    $region38: #{plain_gnn_forward.9} parent=1 // pred_check
      _
    $region39: #{plain_gnn_forward.9} parent=1 // pred_check_branch
      %499 = sbr.rel (0) target = $region41
    $region40: #{plain_gnn_forward.9} parent=1 // pred_region
      %500 = dma.done [#allocation5], 1024
    $region41: #{plain_gnn_forward.9} parent=1 // pred_fallthru
      _
    %501 = vsyncpa [#allocation4], 1
    %502 = vsyncpa [#allocation7], 1
    %503 = vsyncpa [#allocation5], 1

// kernel: plain_gnn_forward.15
$region0: #{plain_gnn_forward.15}
  #allocation0 [shape = 'u32[]', space=smem, size = 0x4, offset = 0x4, fixed_abs, tag = 'smem constant byte address 0x4 - core index']
  #allocation1 [shape = 'u32[144,128]{1,0:T(1,128)}', space=vmem, size = 0x12000, scoped, tag = 'internal scratch']
  #allocation2 [shape = 'f32[128,128]{1,0:T(8,128)}', space=vmem, size = 0x10000, scoped, tag = 'scratch operand']
  %s0 = inlined_call_operand.hbm [shape: bf16[128,128], index: 0, kind: input, shape index: {}]
  %s1 = inlined_call_operand.hbm [shape: bf16[128,128], index: 1, kind: input, shape index: {}]
  %s2 = inlined_call_operand.hbm [shape: f32[1,128], index: 2, kind: input, shape index: {}]
  %s3 = inlined_call_operand.hbm [shape: f32[128,128], index: 3, kind: output, shape index: {}]
  %s4 = sld [smem:[#allocation0]]
  $region42: #{plain_gnn_forward.15} parent=0
    _
  %s6 = ssub.s32 1, %s4
  %s7 = scalar_select 0, %s6, %s4
  $region1: #{plain_gnn_forward.15} parent=0
    #allocation3 [shape = 'u8[32768]{0}', space=vmem, size = 0x8000, scoped, tag = 'input window, operand 0, single buffered']
    #allocation4 [shape = 's32[1]{0}', space=sflag, size = 0x4, scoped, tag = 'scoped memory for plain_gnn_forward.15']
    #allocation5 [shape = 's32[1]{0}', space=sflag, size = 0x4, scoped, tag = 'scoped memory for plain_gnn_forward.15']
    #allocation6 [shape = 'u8[32768]{0}', space=vmem, size = 0x8000, scoped, tag = 'input window, operand 1, single buffered']
    #allocation7 [shape = 's32[1]{0}', space=sflag, size = 0x4, scoped, tag = 'scoped memory for plain_gnn_forward.15']
    #allocation8 [shape = 'u8[512]{0}', space=vmem, size = 0x400, scoped, tag = 'input window, operand 2, single buffered']
    #allocation9 [shape = 'u8[65536]{0}', space=vmem, size = 0x10000, scoped, tag = 'output window, operand 0, single buffered']
    %8 = vsyncpa [#allocation4], 0
    %9 = vsyncpa [#allocation7], 0
    %10 = vsyncpa [#allocation5], 0
    // Predicated region
    $region2: #{plain_gnn_forward.15} parent=1 // pred_check
      _
    $region3: #{plain_gnn_forward.15} parent=1 // pred_check_branch
      %12 = sbr.rel (0) target = $region5
    $region4: #{plain_gnn_forward.15} parent=1 // pred_region
      %s14 = ssub.s32 1024, 1024
      %15 = vsyncadd [#allocation4], %s14
      %s16 = sshll.u32 [#allocation3], 4
      %s17 = int_to_ptr.vmem [resolvable:$true] %s16
      %22 = dma.hbm_to_vmem [thread:$0]  %s0, 1024, %s17, [#allocation4], 64, 64, 4
    $region5: #{plain_gnn_forward.15} parent=1 // pred_fallthru
      _
    // Predicated region
    $region6: #{plain_gnn_forward.15} parent=1 // pred_check
      _
    $region7: #{plain_gnn_forward.15} parent=1 // pred_check_branch
      %24 = sbr.rel (0) target = $region9
    $region8: #{plain_gnn_forward.15} parent=1 // pred_region
      %s26 = ssub.s32 1024, 1024
      %27 = vsyncadd [#allocation7], %s26
      %s28 = sshll.u32 [#allocation6], 4
      %s29 = int_to_ptr.vmem [resolvable:$true] %s28
      %34 = dma.hbm_to_vmem [thread:$0]  %s1, 1024, %s29, [#allocation7], 64, 64, 4
    $region9: #{plain_gnn_forward.15} parent=1 // pred_fallthru
      _
    // Predicated region
    $region10: #{plain_gnn_forward.15} parent=1 // pred_check
      _
    $region11: #{plain_gnn_forward.15} parent=1 // pred_check_branch
      %36 = sbr.rel (0) target = $region13
    $region12: #{plain_gnn_forward.15} parent=1 // pred_region
      %s38 = ssub.s32 16, 16
      %39 = vsyncadd [#allocation7], %s38
      %s41 = sshll.u32 [#allocation8], 4
      %s42 = int_to_ptr.vmem [resolvable:$true] %s41
      %44 = dma.hbm_to_vmem [thread:$0]  %s2, 16, %s42, [#allocation7]
    $region13: #{plain_gnn_forward.15} parent=1 // pred_fallthru
      _
    // Predicated region
    $region14: #{plain_gnn_forward.15} parent=1 // pred_check
      _
    $region15: #{plain_gnn_forward.15} parent=1 // pred_check_branch
      %46 = sbr.rel (0) target = $region17
    $region16: #{plain_gnn_forward.15} parent=1 // pred_region
      %47 = dma.done [#allocation4], 1024
    $region17: #{plain_gnn_forward.15} parent=1 // pred_fallthru
      _
    // Predicated region
    $region18: #{plain_gnn_forward.15} parent=1 // pred_check
      _
    $region19: #{plain_gnn_forward.15} parent=1 // pred_check_branch
      %49 = sbr.rel (0) target = $region21
    $region20: #{plain_gnn_forward.15} parent=1 // pred_region
      %50 = dma.done [#allocation7], 1024
    $region21: #{plain_gnn_forward.15} parent=1 // pred_fallthru
      _
    // Predicated region
    $region22: #{plain_gnn_forward.15} parent=1 // pred_check
      _
    $region23: #{plain_gnn_forward.15} parent=1 // pred_check_branch
      %52 = sbr.rel (0) target = $region25
    $region24: #{plain_gnn_forward.15} parent=1 // pred_region
      %53 = dma.done [#allocation7], 16
    $region25: #{plain_gnn_forward.15} parent=1 // pred_fallthru
      _
    %p55 = scmp.eq.s32.totalorder 0, 0
    // Predicated region
    $region26: #{plain_gnn_forward.15} parent=1 // pred_check
      %p56 = pneg %p55
    $region27: #{plain_gnn_forward.15} parent=1 // pred_check_branch
      %58 = sbr.rel (%p56) target = $region29
    $region28: #{plain_gnn_forward.15} parent=1 // pred_region
      %59 = vst [vmem:[#allocation2] sm:$0xff] 0.0
      %60 = vst [vmem:[#allocation2 + $0x8] sm:$0xff] 0.0
      %61 = vst [vmem:[#allocation2 + $0x10] sm:$0xff] 0.0
      %62 = vst [vmem:[#allocation2 + $0x18] sm:$0xff] 0.0
      %63 = vst [vmem:[#allocation2 + $0x20] sm:$0xff] 0.0
      %64 = vst [vmem:[#allocation2 + $0x28] sm:$0xff] 0.0
      %65 = vst [vmem:[#allocation2 + $0x30] sm:$0xff] 0.0
      %66 = vst [vmem:[#allocation2 + $0x38] sm:$0xff] 0.0
      %67 = vst [vmem:[#allocation2 + $0x40] sm:$0xff] 0.0
      %68 = vst [vmem:[#allocation2 + $0x48] sm:$0xff] 0.0
      %69 = vst [vmem:[#allocation2 + $0x50] sm:$0xff] 0.0
      %70 = vst [vmem:[#allocation2 + $0x58] sm:$0xff] 0.0
      %71 = vst [vmem:[#allocation2 + $0x60] sm:$0xff] 0.0
      %72 = vst [vmem:[#allocation2 + $0x68] sm:$0xff] 0.0
      %73 = vst [vmem:[#allocation2 + $0x70] sm:$0xff] 0.0
      %74 = vst [vmem:[#allocation2 + $0x78] sm:$0xff] 0.0
    $region29: #{plain_gnn_forward.15} parent=1 // pred_fallthru
      _
    %v75 = vld [vmem:[#allocation2] sm:$0xff]
    %v76 = vld [vmem:[#allocation2 + $0x8] sm:$0xff]
    %v77 = vld [vmem:[#allocation2 + $0x10] sm:$0xff]
    %v78 = vld [vmem:[#allocation2 + $0x18] sm:$0xff]
    %v79 = vld [vmem:[#allocation2 + $0x20] sm:$0xff]
    %v80 = vld [vmem:[#allocation2 + $0x28] sm:$0xff]
    %v81 = vld [vmem:[#allocation2 + $0x30] sm:$0xff]
    %v82 = vld [vmem:[#allocation2 + $0x38] sm:$0xff]
    %v83 = vld [vmem:[#allocation2 + $0x40] sm:$0xff]
    %v84 = vld [vmem:[#allocation2 + $0x48] sm:$0xff]
    %v85 = vld [vmem:[#allocation2 + $0x50] sm:$0xff]
    %v86 = vld [vmem:[#allocation2 + $0x58] sm:$0xff]
    %v87 = vld [vmem:[#allocation2 + $0x60] sm:$0xff]
    %v88 = vld [vmem:[#allocation2 + $0x68] sm:$0xff]
    %v89 = vld [vmem:[#allocation2 + $0x70] sm:$0xff]
    %v90 = vld [vmem:[#allocation2 + $0x78] sm:$0xff]
    %v91 = vld [vmem:[#allocation3] sm:$0xf]
    %v92 = vld [vmem:[#allocation3 + $0x4] sm:$0xf]
    %v93 = vld [vmem:[#allocation3 + $0x8] sm:$0xf]
    %v94 = vld [vmem:[#allocation3 + $0xc] sm:$0xf]
    %v95 = vld [vmem:[#allocation3 + $0x10] sm:$0xf]
    %v96 = vld [vmem:[#allocation3 + $0x14] sm:$0xf]
    %v97 = vld [vmem:[#allocation3 + $0x18] sm:$0xf]
    %v98 = vld [vmem:[#allocation3 + $0x1c] sm:$0xf]
    %v99 = vld [vmem:[#allocation3 + $0x20] sm:$0xf]
    %v100 = vld [vmem:[#allocation3 + $0x24] sm:$0xf]
    %v101 = vld [vmem:[#allocation3 + $0x28] sm:$0xf]
    %v102 = vld [vmem:[#allocation3 + $0x2c] sm:$0xf]
    %v103 = vld [vmem:[#allocation3 + $0x30] sm:$0xf]
    %v104 = vld [vmem:[#allocation3 + $0x34] sm:$0xf]
    %v105 = vld [vmem:[#allocation3 + $0x38] sm:$0xf]
    %v106 = vld [vmem:[#allocation3 + $0x3c] sm:$0xf]
    %v107 = vld [vmem:[#allocation6] sm:$0xf]
    %v108 = vld [vmem:[#allocation6 + $0x4] sm:$0xf]
    %v109 = vld [vmem:[#allocation6 + $0x8] sm:$0xf]
    %v110 = vld [vmem:[#allocation6 + $0xc] sm:$0xf]
    %v111 = vld [vmem:[#allocation6 + $0x10] sm:$0xf]
    %v112 = vld [vmem:[#allocation6 + $0x14] sm:$0xf]
    %v113 = vld [vmem:[#allocation6 + $0x18] sm:$0xf]
    %v114 = vld [vmem:[#allocation6 + $0x1c] sm:$0xf]
    %v115 = vld [vmem:[#allocation6 + $0x20] sm:$0xf]
    %v116 = vld [vmem:[#allocation6 + $0x24] sm:$0xf]
    %v117 = vld [vmem:[#allocation6 + $0x28] sm:$0xf]
    %v118 = vld [vmem:[#allocation6 + $0x2c] sm:$0xf]
    %v119 = vld [vmem:[#allocation6 + $0x30] sm:$0xf]
    %v120 = vld [vmem:[#allocation6 + $0x34] sm:$0xf]
    %v121 = vld [vmem:[#allocation6 + $0x38] sm:$0xf]
    %v122 = vld [vmem:[#allocation6 + $0x3c] sm:$0xf]
    %v139 = vunpack.c.l.b16 %v91
    %v140 = vunpack.c.l.b16 %v92
    %v141 = vunpack.c.l.b16 %v93
    %v142 = vunpack.c.l.b16 %v94
    %v143 = vunpack.c.l.b16 %v95
    %v144 = vunpack.c.l.b16 %v96
    %v145 = vunpack.c.l.b16 %v97
    %v146 = vunpack.c.l.b16 %v98
    %v147 = vunpack.c.l.b16 %v99
    %v148 = vunpack.c.l.b16 %v100
    %v149 = vunpack.c.l.b16 %v101
    %v150 = vunpack.c.l.b16 %v102
    %v151 = vunpack.c.l.b16 %v103
    %v152 = vunpack.c.l.b16 %v104
    %v153 = vunpack.c.l.b16 %v105
    %v154 = vunpack.c.l.b16 %v106
    %v155 = vpack.c.b16 %v140, %v139
    %v156 = vpack.c.b16 %v142, %v141
    %v157 = vpack.c.b16 %v144, %v143
    %v158 = vpack.c.b16 %v146, %v145
    %v159 = vpack.c.b16 %v148, %v147
    %v160 = vpack.c.b16 %v150, %v149
    %v161 = vpack.c.b16 %v152, %v151
    %v162 = vpack.c.b16 %v154, %v153
    %v187 = vunpack.c.l.b16 %v107
    %v188 = vunpack.c.l.b16 %v108
    %v189 = vunpack.c.l.b16 %v109
    %v190 = vunpack.c.l.b16 %v110
    %v191 = vunpack.c.l.b16 %v111
    %v192 = vunpack.c.l.b16 %v112
    %v193 = vunpack.c.l.b16 %v113
    %v194 = vunpack.c.l.b16 %v114
    %v195 = vunpack.c.l.b16 %v115
    %v196 = vunpack.c.l.b16 %v116
    %v197 = vunpack.c.l.b16 %v117
    %v198 = vunpack.c.l.b16 %v118
    %v199 = vunpack.c.l.b16 %v119
    %v200 = vunpack.c.l.b16 %v120
    %v201 = vunpack.c.l.b16 %v121
    %v202 = vunpack.c.l.b16 %v122
    %v203 = vpack.c.b16 %v188, %v187
    %v204 = vpack.c.b16 %v190, %v189
    %v205 = vpack.c.b16 %v192, %v191
    %v206 = vpack.c.b16 %v194, %v193
    %v207 = vpack.c.b16 %v196, %v195
    %v208 = vpack.c.b16 %v198, %v197
    %v209 = vpack.c.b16 %v200, %v199
    %v210 = vpack.c.b16 %v202, %v201
    %219 = vmatprep.subr.bf16.mxu0 0
    %220 = vmatpush1.bf16.msra.mxu0 %v203
    %221 = vmatprep.subr.bf16.mxu0 0
    %222 = vmatpush1.bf16.msra.mxu0 %v204
    %223 = vmatprep.subr.bf16.mxu0 0
    %224 = vmatpush1.bf16.msra.mxu0 %v205
    %225 = vmatprep.subr.bf16.mxu0 0
    %226 = vmatpush1.bf16.msra.mxu0 %v206
    %227 = vmatprep.subr.bf16.mxu0 0
    %228 = vmatpush1.bf16.msra.mxu0 %v207
    %229 = vmatprep.subr.bf16.mxu0 0
    %230 = vmatpush1.bf16.msra.mxu0 %v208
    %231 = vmatprep.subr.bf16.mxu0 0
    %232 = vmatpush1.bf16.msra.mxu0 %v209
    %233 = vmatprep.subr.bf16.mxu0 0
    %234 = vmatpush1.bf16.msra.mxu0 %v210
    %235 = vmatprep.subr.bf16.mxu0 0
    %236 = vmatpush1.bf16.msra.mxu0 0
    %237 = vmatprep.subr.bf16.mxu0 0
    %238 = vmatpush1.bf16.msra.mxu0 0
    %239 = vmatprep.subr.bf16.mxu0 0
    %240 = vmatpush1.bf16.msra.mxu0 0
    %241 = vmatprep.subr.bf16.mxu0 0
    %242 = vmatpush1.bf16.msra.mxu0 0
    %243 = vmatprep.subr.bf16.mxu0 0
    %244 = vmatpush1.bf16.msra.mxu0 0
    %245 = vmatprep.subr.bf16.mxu0 0
    %246 = vmatpush1.bf16.msra.mxu0 0
    %247 = vmatprep.subr.bf16.mxu0 0
    %248 = vmatpush1.bf16.msra.mxu0 0
    %249 = vmatprep.subr.bf16.mxu0 0
    %250 = vmatpush1.bf16.msra.mxu0 0
    %251 = vmatprep.mubr.bf16.mxu0 0
    %252 = vmatmul.mubr.bf16.gmra.mrb[0].mxu0 %v155
    %v253 = vpop.f32.mrb[0].mxu0
    %v254 = vadd.f32 0.0, %v253
    %v255 = vpop.f32.mrb[0].mxu0
    %v256 = vpop.f32.mrb[0].mxu0
    %v257 = vadd.f32 0.0, %v256
    %v258 = vpop.f32.mrb[0].mxu0
    %259 = vmatprep.mubr.bf16.mxu0 0
    %260 = vmatmul.mubr.bf16.gmra.mrb[0].mxu0 %v156
    %v261 = vpop.f32.mrb[0].mxu0
    %v262 = vadd.f32 0.0, %v261
    %v263 = vpop.f32.mrb[0].mxu0
    %v264 = vpop.f32.mrb[0].mxu0
    %v265 = vadd.f32 0.0, %v264
    %v266 = vpop.f32.mrb[0].mxu0
    %267 = vmatprep.mubr.bf16.mxu0 0
    %268 = vmatmul.mubr.bf16.gmra.mrb[0].mxu0 %v157
    %v269 = vpop.f32.mrb[0].mxu0
    %v270 = vadd.f32 0.0, %v269
    %v271 = vpop.f32.mrb[0].mxu0
    %v272 = vpop.f32.mrb[0].mxu0
    %v273 = vadd.f32 0.0, %v272
    %v274 = vpop.f32.mrb[0].mxu0
    %275 = vmatprep.mubr.bf16.mxu0 0
    %276 = vmatmul.mubr.bf16.gmra.mrb[0].mxu0 %v158
    %v277 = vpop.f32.mrb[0].mxu0
    %v278 = vadd.f32 0.0, %v277
    %v279 = vpop.f32.mrb[0].mxu0
    %v280 = vpop.f32.mrb[0].mxu0
    %v281 = vadd.f32 0.0, %v280
    %v282 = vpop.f32.mrb[0].mxu0
    %283 = vmatprep.mubr.bf16.mxu0 0
    %284 = vmatmul.mubr.bf16.gmra.mrb[0].mxu0 %v159
    %v285 = vpop.f32.mrb[0].mxu0
    %v286 = vadd.f32 0.0, %v285
    %v287 = vpop.f32.mrb[0].mxu0
    %v288 = vpop.f32.mrb[0].mxu0
    %v289 = vadd.f32 0.0, %v288
    %v290 = vpop.f32.mrb[0].mxu0
    %291 = vmatprep.mubr.bf16.mxu0 0
    %292 = vmatmul.mubr.bf16.gmra.mrb[0].mxu0 %v160
    %v293 = vpop.f32.mrb[0].mxu0
    %v294 = vadd.f32 0.0, %v293
    %v295 = vpop.f32.mrb[0].mxu0
    %v296 = vpop.f32.mrb[0].mxu0
    %v297 = vadd.f32 0.0, %v296
    %v298 = vpop.f32.mrb[0].mxu0
    %299 = vmatprep.mubr.bf16.mxu0 0
    %300 = vmatmul.mubr.bf16.gmra.mrb[0].mxu0 %v161
    %v301 = vpop.f32.mrb[0].mxu0
    %v302 = vadd.f32 0.0, %v301
    %v303 = vpop.f32.mrb[0].mxu0
    %v304 = vpop.f32.mrb[0].mxu0
    %v305 = vadd.f32 0.0, %v304
    %v306 = vpop.f32.mrb[0].mxu0
    %307 = vmatprep.mubr.bf16.mxu0 0
    %308 = vmatmul.mubr.bf16.gmra.mrb[0].mxu0 %v162
    %v309 = vpop.f32.mrb[0].mxu0
    %v310 = vadd.f32 0.0, %v309
    %v311 = vpop.f32.mrb[0].mxu0
    %v312 = vpop.f32.mrb[0].mxu0
    %v313 = vadd.f32 0.0, %v312
    %v314 = vpop.f32.mrb[0].mxu0
    %315 = vdwg.mxu0
    %v316 = vadd.f32 %v75, %v254
    %v317 = vadd.f32 %v76, %v257
    %v318 = vadd.f32 %v77, %v262
    %v319 = vadd.f32 %v78, %v265
    %v320 = vadd.f32 %v79, %v270
    %v321 = vadd.f32 %v80, %v273
    %v322 = vadd.f32 %v81, %v278
    %v323 = vadd.f32 %v82, %v281
    %v324 = vadd.f32 %v83, %v286
    %v325 = vadd.f32 %v84, %v289
    %v326 = vadd.f32 %v85, %v294
    %v327 = vadd.f32 %v86, %v297
    %v328 = vadd.f32 %v87, %v302
    %v329 = vadd.f32 %v88, %v305
    %v330 = vadd.f32 %v89, %v310
    %v331 = vadd.f32 %v90, %v313
    %332 = vst [vmem:[#allocation2] sm:$0xff] %v316
    %333 = vst [vmem:[#allocation2 + $0x8] sm:$0xff] %v317
    %334 = vst [vmem:[#allocation2 + $0x10] sm:$0xff] %v318
    %335 = vst [vmem:[#allocation2 + $0x18] sm:$0xff] %v319
    %336 = vst [vmem:[#allocation2 + $0x20] sm:$0xff] %v320
    %337 = vst [vmem:[#allocation2 + $0x28] sm:$0xff] %v321
    %338 = vst [vmem:[#allocation2 + $0x30] sm:$0xff] %v322
    %339 = vst [vmem:[#allocation2 + $0x38] sm:$0xff] %v323
    %340 = vst [vmem:[#allocation2 + $0x40] sm:$0xff] %v324
    %341 = vst [vmem:[#allocation2 + $0x48] sm:$0xff] %v325
    %342 = vst [vmem:[#allocation2 + $0x50] sm:$0xff] %v326
    %343 = vst [vmem:[#allocation2 + $0x58] sm:$0xff] %v327
    %344 = vst [vmem:[#allocation2 + $0x60] sm:$0xff] %v328
    %345 = vst [vmem:[#allocation2 + $0x68] sm:$0xff] %v329
    %346 = vst [vmem:[#allocation2 + $0x70] sm:$0xff] %v330
    %347 = vst [vmem:[#allocation2 + $0x78] sm:$0xff] %v331
    // Predicated region
    $region30: #{plain_gnn_forward.15} parent=1 // pred_check
      %p348 = pneg %p55
    $region31: #{plain_gnn_forward.15} parent=1 // pred_check_branch
      %350 = sbr.rel (%p348) target = $region33
    $region32: #{plain_gnn_forward.15} parent=1 // pred_region
      %v351 = vld [vmem:[#allocation2] sm:$0xff]
      %v352 = vld [vmem:[#allocation2 + $0x8] sm:$0xff]
      %v353 = vld [vmem:[#allocation2 + $0x10] sm:$0xff]
      %v354 = vld [vmem:[#allocation2 + $0x18] sm:$0xff]
      %v355 = vld [vmem:[#allocation2 + $0x20] sm:$0xff]
      %v356 = vld [vmem:[#allocation2 + $0x28] sm:$0xff]
      %v357 = vld [vmem:[#allocation2 + $0x30] sm:$0xff]
      %v358 = vld [vmem:[#allocation2 + $0x38] sm:$0xff]
      %v359 = vld [vmem:[#allocation2 + $0x40] sm:$0xff]
      %v360 = vld [vmem:[#allocation2 + $0x48] sm:$0xff]
      %v361 = vld [vmem:[#allocation2 + $0x50] sm:$0xff]
      %v362 = vld [vmem:[#allocation2 + $0x58] sm:$0xff]
      %v363 = vld [vmem:[#allocation2 + $0x60] sm:$0xff]
      %v364 = vld [vmem:[#allocation2 + $0x68] sm:$0xff]
      %v365 = vld [vmem:[#allocation2 + $0x70] sm:$0xff]
      %v366 = vld [vmem:[#allocation2 + $0x78] sm:$0xff]
      %v367 = vld [vmem:[#allocation8] sm:$0x1]
      %v369 = vlaneseq
      %v370 = vshrl.u32 %v369, 7
      %v371 = vsub.s32 0, %v370
      %v372 = vrot.slane %v367, %v371
      %v374 = vadd.f32 %v351, %v372
      %v375 = vadd.f32 %v352, %v372
      %v376 = vadd.f32 %v353, %v372
      %v377 = vadd.f32 %v354, %v372
      %v378 = vadd.f32 %v355, %v372
      %v379 = vadd.f32 %v356, %v372
      %v380 = vadd.f32 %v357, %v372
      %v381 = vadd.f32 %v358, %v372
      %v382 = vadd.f32 %v359, %v372
      %v383 = vadd.f32 %v360, %v372
      %v384 = vadd.f32 %v361, %v372
      %v385 = vadd.f32 %v362, %v372
      %v386 = vadd.f32 %v363, %v372
      %v387 = vadd.f32 %v364, %v372
      %v388 = vadd.f32 %v365, %v372
      %v389 = vadd.f32 %v366, %v372
      %v390 = vmax.f32 %v374, 0.0
      %v391 = vmax.f32 %v375, 0.0
      %v392 = vmax.f32 %v376, 0.0
      %v393 = vmax.f32 %v377, 0.0
      %v394 = vmax.f32 %v378, 0.0
      %v395 = vmax.f32 %v379, 0.0
      %v396 = vmax.f32 %v380, 0.0
      %v397 = vmax.f32 %v381, 0.0
      %v398 = vmax.f32 %v382, 0.0
      %v399 = vmax.f32 %v383, 0.0
      %v400 = vmax.f32 %v384, 0.0
      %v401 = vmax.f32 %v385, 0.0
      %v402 = vmax.f32 %v386, 0.0
      %v403 = vmax.f32 %v387, 0.0
      %v404 = vmax.f32 %v388, 0.0
      %v405 = vmax.f32 %v389, 0.0
      %406 = vst [vmem:[#allocation9] sm:$0xff] %v390
      %407 = vst [vmem:[#allocation9 + $0x8] sm:$0xff] %v391
      %408 = vst [vmem:[#allocation9 + $0x10] sm:$0xff] %v392
      %409 = vst [vmem:[#allocation9 + $0x18] sm:$0xff] %v393
      %410 = vst [vmem:[#allocation9 + $0x20] sm:$0xff] %v394
      %411 = vst [vmem:[#allocation9 + $0x28] sm:$0xff] %v395
      %412 = vst [vmem:[#allocation9 + $0x30] sm:$0xff] %v396
      %413 = vst [vmem:[#allocation9 + $0x38] sm:$0xff] %v397
      %414 = vst [vmem:[#allocation9 + $0x40] sm:$0xff] %v398
      %415 = vst [vmem:[#allocation9 + $0x48] sm:$0xff] %v399
      %416 = vst [vmem:[#allocation9 + $0x50] sm:$0xff] %v400
      %417 = vst [vmem:[#allocation9 + $0x58] sm:$0xff] %v401
      %418 = vst [vmem:[#allocation9 + $0x60] sm:$0xff] %v402
      %419 = vst [vmem:[#allocation9 + $0x68] sm:$0xff] %v403
      %420 = vst [vmem:[#allocation9 + $0x70] sm:$0xff] %v404
      %421 = vst [vmem:[#allocation9 + $0x78] sm:$0xff] %v405
    $region33: #{plain_gnn_forward.15} parent=1 // pred_fallthru
      _
    // Predicated region
    $region34: #{plain_gnn_forward.15} parent=1 // pred_check
      _
    $region35: #{plain_gnn_forward.15} parent=1 // pred_check_branch
      %423 = sbr.rel (0) target = $region37
    $region36: #{plain_gnn_forward.15} parent=1 // pred_region
      %s425 = ssub.s32 2048, 2048
      %426 = vsyncadd [#allocation5], %s425
      %s427 = sshll.u32 [#allocation9], 4
      %s428 = int_to_ptr.vmem [resolvable:$true] %s427
      %433 = dma.vmem_to_hbm [thread:$0]  %s428, 2048, %s3, [#allocation5], 128, 128, 8
    $region37: #{plain_gnn_forward.15} parent=1 // pred_fallthru
      _
    // Predicated region
    $region38: #{plain_gnn_forward.15} parent=1 // pred_check
      _
    $region39: #{plain_gnn_forward.15} parent=1 // pred_check_branch
      %435 = sbr.rel (0) target = $region41
    $region40: #{plain_gnn_forward.15} parent=1 // pred_region
      %436 = dma.done [#allocation5], 2048
    $region41: #{plain_gnn_forward.15} parent=1 // pred_fallthru
      _
    %437 = vsyncpa [#allocation4], 1
    %438 = vsyncpa [#allocation7], 1
    %439 = vsyncpa [#allocation5], 1

</llo_original>
